<compile_context>
chip_gen: v6e
topology: v6e:2x2x1
jax: 0.10.0
libtpu: 0.0.40
codegen_flags: <defaults>
</compile_context>

<pallas_src>
import functools

import jax
import jax.numpy as jnp
from jax.experimental import pallas as pl
from jax.experimental.pallas import tpu as pltpu


def _light_tail_gcn_kernel(head, feat_dim, adj_ref, awl_ref, xmm_ref, xt_ref, *rest):
    """One [TM]-row tile of LightTailGCN.forward (use_relation_rf=False, ablation=0)."""
    if head:
        w_self_ref, w_ngb_ref, r_ref, hk_ref, out_ref = rest
        deg_ref = None
    else:
        deg_ref, w_self_ref, w_ngb_ref, r_ref, hk_ref, out_ref = rest

    D = feat_dim
    x_mm = xmm_ref[...]  # (N, D) resident RHS in the adjacency compute dtype (bf16 by default)

    # neighbor = adj_norm @ x ; hk0 = adj_with_loop_norm(_plus_1) @ x
    # Back-to-back MXU calls sharing the same resident RHS; f32 accumulation.
    neighbor = jnp.dot(adj_ref[...], x_mm, preferred_element_type=jnp.float32)  # (TM, D)
    hk0 = jnp.dot(awl_ref[...], x_mm, preferred_element_type=jnp.float32)       # (TM, D)

    # ---- Relation (ablation = 0): gamma/beta fused into one 2D-wide slab ----
    x_t = xt_ref[...]  # (TM, D) f32
    gb = (jnp.dot(x_t, w_self_ref[...], preferred_element_type=jnp.float32)
          + jnp.dot(neighbor, w_ngb_ref[...], preferred_element_type=jnp.float32))  # (TM, 2D)
    gb = jnp.where(gb >= 0.0, gb, 0.2 * gb)          # LeakyReLU(0.2) on both halves
    gamma = gb[:, :D] + 1.0                          # LeakyReLU(gamma) + 1
    beta = gb[:, D:]                                 # LeakyReLU(beta)
    m = x_t + (gamma * r_ref[...] + beta) - neighbor  # missing_info == output
    out_ref[...] = m

    if head:
        hk_ref[...] = hk0
    else:
        inv = pl.reciprocal(deg_ref[...] + 2.0, approx=True)   # EUP slot instead of VPU divide
        hk_ref[...] = hk0 + m * inv


def light_tail_gcn(x, adj_norm, adj_with_loop_norm, adj_with_loop_norm_plus_1,
                   adj_node_degree, params, *, head,
                   adj_dtype=jnp.bfloat16, block_rows=512):
    """Pallas wrapper for LightTailGCN.forward (use_relation_rf=False)."""
    N, D = x.shape
    head = bool(head)

    # Per `head`, only one of the with-loop adjacencies is ever used: never DMA the other.
    awl = adj_with_loop_norm if head else adj_with_loop_norm_plus_1

    TM = max(8, min(int(block_rows), N))
    grid = (pl.cdiv(N, TM),)

    # Adjacency matmul operands in (by default) bf16: halves the dominant N^2 HBM traffic
    # and uses the native bf16 MXU path. Epilogue math stays in f32.
    adj_c = adj_norm.astype(adj_dtype)
    awl_c = awl.astype(adj_dtype)
    x_mm = x.astype(adj_dtype)
    x_f32 = x.astype(jnp.float32)

    # nn.Linear(bias=False): y = x @ W.T.  Fuse the 4 DxD relation weights into two (D, 2D)
    # blocks so the gamma/beta pre-activations come out of 2 lane-denser MXU calls instead of 4.
    w_self = jnp.concatenate([params["gamma_1"].T, params["beta_1"].T], axis=1).astype(jnp.float32)
    w_ngb = jnp.concatenate([params["gamma_2"].T, params["beta_2"].T], axis=1).astype(jnp.float32)
    r = params["r"].astype(jnp.float32)

    inputs = [adj_c, awl_c, x_mm, x_f32]
    in_specs = [
        pl.BlockSpec((TM, N), lambda i: (i, 0)),   # adj_norm row-slab (auto double-buffered)
        pl.BlockSpec((TM, N), lambda i: (i, 0)),   # selected with-loop adjacency row-slab
        pl.BlockSpec((N, D), lambda i: (0, 0)),    # resident RHS x (compute dtype)
        pl.BlockSpec((TM, D), lambda i: (i, 0)),   # x row-tile (f32) for the epilogue
    ]
    if not head:
        deg = adj_node_degree.reshape(N, 1).astype(jnp.float32)
        inputs.append(deg)
        in_specs.append(pl.BlockSpec((TM, 1), lambda i: (i, 0)))
    inputs += [w_self, w_ngb, r]
    in_specs += [
        pl.BlockSpec((D, 2 * D), lambda i: (0, 0)),
        pl.BlockSpec((D, 2 * D), lambda i: (0, 0)),
        pl.BlockSpec((1, D), lambda i: (0, 0)),
    ]

    out_shape = (jax.ShapeDtypeStruct((N, D), jnp.float32),
                 jax.ShapeDtypeStruct((N, D), jnp.float32))
    out_specs = (pl.BlockSpec((TM, D), lambda i: (i, 0)),
                 pl.BlockSpec((TM, D), lambda i: (i, 0)))

    # VMEM budget: the two double-buffered [TM, N] adjacency slabs dominate; size it
    # explicitly so pipelining survives on v7x's smaller VMEM as well.
    adj_itm = jnp.dtype(adj_dtype).itemsize
    est = (2 * 2 * TM * N * adj_itm          # 2 adjacency inputs x 2 pipeline buffers
           + 2 * N * D * adj_itm             # resident x (compute dtype)
           + 2 * 4 * TM * D * 4              # x tile + deg + 2 outputs, double-buffered
           + 2 * (2 * D * 2 * D + D) * 4)    # fused weights + r
    vmem_limit = int(min(max(2 * est, 32 * 1024 * 1024), 120 * 1024 * 1024))

    kernel = functools.partial(_light_tail_gcn_kernel, head, D)
    h_k, output = pl.pallas_call(
        kernel,
        grid=grid,
        in_specs=in_specs,
        out_specs=out_specs,
        out_shape=out_shape,
        compiler_params=pltpu.CompilerParams(
            dimension_semantics=("parallel",),
            vmem_limit_bytes=vmem_limit),
    )(*inputs)
    return h_k, output


def _reference(x, adj_norm, adj_with_loop_norm, adj_with_loop_norm_plus_1,
               adj_node_degree, params, head):
    neighbor = adj_norm @ x
    gamma = x @ params["gamma_1"].T + neighbor @ params["gamma_2"].T
    gamma = jnp.where(gamma >= 0, gamma, 0.2 * gamma) + 1.0
    beta = x @ params["beta_1"].T + neighbor @ params["beta_2"].T
    beta = jnp.where(beta >= 0, beta, 0.2 * beta)
    m = x + (gamma * params["r"] + beta) - neighbor
    if head:
        h_k = adj_with_loop_norm @ x
    else:
        h_k = adj_with_loop_norm_plus_1 @ x + m / (adj_node_degree + 2.0).reshape(-1, 1)
    return h_k, m


if __name__ == "__main__":
    N, D = 256, 32  # small synthetic graph: 256 nodes, 32-dim features (2 row tiles of 128)
    key = jax.random.PRNGKey(0)
    k = jax.random.split(key, 10)

    x = jax.random.normal(k[0], (N, D), dtype=jnp.float32)

    # Dense stand-ins for the (normalized) sparse adjacency matrices.
    adj = (jax.random.uniform(k[1], (N, N)) < 0.05).astype(jnp.float32)
    adj_node_degree = adj.sum(axis=1)
    adj_norm = adj / jnp.maximum(adj_node_degree, 1.0)[:, None]
    adj_with_loop = adj + jnp.eye(N, dtype=jnp.float32)
    adj_with_loop_norm = adj_with_loop / adj_with_loop.sum(axis=1, keepdims=True)
    adj_with_loop_norm_plus_1 = adj_with_loop / (adj_with_loop.sum(axis=1, keepdims=True) + 1.0)

    # Deterministic parameter init (shapes from Relation.__init__: 4 x Linear(D, D, bias=False), r [1, D]).
    stdv = 1.0 / (D ** 0.5)
    params = {
        "gamma_1": jax.random.uniform(k[2], (D, D), minval=-stdv, maxval=stdv, dtype=jnp.float32),
        "gamma_2": jax.random.uniform(k[3], (D, D), minval=-stdv, maxval=stdv, dtype=jnp.float32),
        "beta_1":  jax.random.uniform(k[4], (D, D), minval=-stdv, maxval=stdv, dtype=jnp.float32),
        "beta_2":  jax.random.uniform(k[5], (D, D), minval=-stdv, maxval=stdv, dtype=jnp.float32),
        "r":       jax.random.uniform(k[6], (1, D), minval=-stdv, maxval=stdv, dtype=jnp.float32),
    }

    for head in (True, False):
        h_k_ref, out_ref = _reference(x, adj_norm, adj_with_loop_norm,
                                      adj_with_loop_norm_plus_1, adj_node_degree,
                                      params, head)
        for adj_dtype, tol in ((jnp.float32, 2e-3), (jnp.bfloat16, 3e-2)):
            h_k, output = light_tail_gcn(x, adj_norm, adj_with_loop_norm,
                                         adj_with_loop_norm_plus_1, adj_node_degree,
                                         params, head=head,
                                         adj_dtype=adj_dtype, block_rows=128)
            jax.block_until_ready((h_k, output))
            assert jnp.allclose(h_k, h_k_ref, atol=tol, rtol=tol), (head, str(adj_dtype), "h_k")
            assert jnp.allclose(output, out_ref, atol=tol, rtol=tol), (head, str(adj_dtype), "output")

    print("KERNEL_OK")
</pallas_src>

<mosaic_0001>
module attributes {stable_mosaic.version = 11 : i64} {
  func.func @_light_tail_gcn_kernel(%arg0: i32, %arg1: memref<128x256xf32, #tpu.memory_space<vmem>>, %arg2: memref<128x256xf32, #tpu.memory_space<vmem>>, %arg3: memref<256x32xf32, #tpu.memory_space<vmem>>, %arg4: memref<128x32xf32, #tpu.memory_space<vmem>>, %arg5: memref<32x64xf32, #tpu.memory_space<vmem>>, %arg6: memref<32x64xf32, #tpu.memory_space<vmem>>, %arg7: memref<1x32xf32, #tpu.memory_space<vmem>>, %arg8: memref<128x32xf32, #tpu.memory_space<vmem>>, %arg9: memref<128x32xf32, #tpu.memory_space<vmem>>) attributes {dimension_semantics = [#tpu.dimension_semantics<parallel>], iteration_bounds = array<i64: 2>, scalar_prefetch = 0 : i64, scratch_operands = 0 : i64, tpu.core_type = #tpu.core_type<tc>, window_params = [{transform_indices = @transform_0, window_bounds = array<i64: 128, 256>}, {transform_indices = @transform_1, window_bounds = array<i64: 128, 256>}, {pipeline_mode = #tpu.pipeline_mode<synchronous>, transform_indices = @transform_2, window_bounds = array<i64: 256, 32>}, {transform_indices = @transform_3, window_bounds = array<i64: 128, 32>}, {pipeline_mode = #tpu.pipeline_mode<synchronous>, transform_indices = @transform_4, window_bounds = array<i64: 32, 64>}, {pipeline_mode = #tpu.pipeline_mode<synchronous>, transform_indices = @transform_5, window_bounds = array<i64: 32, 64>}, {pipeline_mode = #tpu.pipeline_mode<synchronous>, transform_indices = @transform_6, window_bounds = array<i64: 1, 32>}, {transform_indices = @transform_7, window_bounds = array<i64: 128, 32>}, {transform_indices = @transform_8, window_bounds = array<i64: 128, 32>}]} {
    %c0 = arith.constant 0 : index
    %c0_0 = arith.constant 0 : index
    %0 = vector.load %arg3[%c0, %c0_0] : memref<256x32xf32, #tpu.memory_space<vmem>>, vector<256x32xf32>
    %c0_1 = arith.constant 0 : index
    %c0_2 = arith.constant 0 : index
    %1 = vector.load %arg1[%c0_1, %c0_2] : memref<128x256xf32, #tpu.memory_space<vmem>>, vector<128x256xf32>
    %cst = arith.constant dense<0.000000e+00> : vector<128x32xf32>
    %2 = tpu.matmul %1, %0, %cst {dimension_numbers = #tpu.dot_dimension_numbers<[1], [0], [0], [1], [0, 0, 1, 1], [], []>} : vector<128x256xf32>, vector<256x32xf32>, vector<128x32xf32> -> vector<128x32xf32>
    %c0_3 = arith.constant 0 : index
    %c0_4 = arith.constant 0 : index
    %3 = vector.load %arg2[%c0_3, %c0_4] : memref<128x256xf32, #tpu.memory_space<vmem>>, vector<128x256xf32>
    %cst_5 = arith.constant dense<0.000000e+00> : vector<128x32xf32>
    %4 = tpu.matmul %3, %0, %cst_5 {dimension_numbers = #tpu.dot_dimension_numbers<[1], [0], [0], [1], [0, 0, 1, 1], [], []>} : vector<128x256xf32>, vector<256x32xf32>, vector<128x32xf32> -> vector<128x32xf32>
    %c0_6 = arith.constant 0 : index
    %c0_7 = arith.constant 0 : index
    %5 = vector.load %arg4[%c0_6, %c0_7] : memref<128x32xf32, #tpu.memory_space<vmem>>, vector<128x32xf32>
    %c0_8 = arith.constant 0 : index
    %c0_9 = arith.constant 0 : index
    %6 = vector.load %arg5[%c0_8, %c0_9] : memref<32x64xf32, #tpu.memory_space<vmem>>, vector<32x64xf32>
    %cst_10 = arith.constant dense<0.000000e+00> : vector<128x64xf32>
    %7 = tpu.matmul %5, %6, %cst_10 {dimension_numbers = #tpu.dot_dimension_numbers<[1], [0], [0], [1], [0, 0, 1, 1], [], []>} : vector<128x32xf32>, vector<32x64xf32>, vector<128x64xf32> -> vector<128x64xf32>
    %c0_11 = arith.constant 0 : index
    %c0_12 = arith.constant 0 : index
    %8 = vector.load %arg6[%c0_11, %c0_12] : memref<32x64xf32, #tpu.memory_space<vmem>>, vector<32x64xf32>
    %cst_13 = arith.constant dense<0.000000e+00> : vector<128x64xf32>
    %9 = tpu.matmul %2, %8, %cst_13 {dimension_numbers = #tpu.dot_dimension_numbers<[1], [0], [0], [1], [0, 0, 1, 1], [], []>} : vector<128x32xf32>, vector<32x64xf32>, vector<128x64xf32> -> vector<128x64xf32>
    %10 = arith.addf %7, %9 : vector<128x64xf32>
    %cst_14 = arith.constant 0.000000e+00 : f32
    %11 = vector.broadcast %cst_14 : f32 to vector<128x64xf32>
    %12 = arith.cmpf oge, %10, %11 : vector<128x64xf32>
    %cst_15 = arith.constant 2.000000e-01 : f32
    %13 = vector.broadcast %cst_15 : f32 to vector<128x64xf32>
    %14 = arith.mulf %13, %10 : vector<128x64xf32>
    %15 = arith.select %12, %10, %14 : vector<128x64xi1>, vector<128x64xf32>
    %16 = vector.extract_strided_slice %15 {offsets = [0, 0], sizes = [128, 32], strides = [1, 1]} : vector<128x64xf32> to vector<128x32xf32>
    %cst_16 = arith.constant 1.000000e+00 : f32
    %17 = vector.broadcast %cst_16 : f32 to vector<128x32xf32>
    %18 = arith.addf %16, %17 : vector<128x32xf32>
    %19 = vector.extract_strided_slice %15 {offsets = [0, 32], sizes = [128, 32], strides = [1, 1]} : vector<128x64xf32> to vector<128x32xf32>
    %c0_17 = arith.constant 0 : index
    %c0_18 = arith.constant 0 : index
    %20 = vector.load %arg7[%c0_17, %c0_18] : memref<1x32xf32, #tpu.memory_space<vmem>>, vector<1x32xf32>
    %21 = vector.broadcast %20 : vector<1x32xf32> to vector<128x32xf32>
    %22 = arith.mulf %18, %21 : vector<128x32xf32>
    %23 = arith.addf %22, %19 : vector<128x32xf32>
    %24 = arith.addf %5, %23 : vector<128x32xf32>
    %25 = arith.subf %24, %2 : vector<128x32xf32>
    %c0_19 = arith.constant 0 : index
    %c0_20 = arith.constant 0 : index
    %26 = vector.load %arg9[%c0_19, %c0_20] : memref<128x32xf32, #tpu.memory_space<vmem>>, vector<128x32xf32>
    tpu.vector_store %arg9[%c0_19, %c0_20], %25 {strides = array<i32>} : memref<128x32xf32, #tpu.memory_space<vmem>>, vector<128x32xf32>,
    %c0_21 = arith.constant 0 : index
    %c0_22 = arith.constant 0 : index
    %27 = vector.load %arg8[%c0_21, %c0_22] : memref<128x32xf32, #tpu.memory_space<vmem>>, vector<128x32xf32>
    tpu.vector_store %arg8[%c0_21, %c0_22], %4 {strides = array<i32>} : memref<128x32xf32, #tpu.memory_space<vmem>>, vector<128x32xf32>,
    return
  }
  func.func @transform_0(%arg0: i32) -> (i32, i32) {
    %c0_i32 = arith.constant 0 : i32
    %c0_i32_0 = arith.constant 0 : i32
    return %arg0, %c0_i32 : i32, i32
  }
  func.func @transform_1(%arg0: i32) -> (i32, i32) {
    %c0_i32 = arith.constant 0 : i32
    %c0_i32_0 = arith.constant 0 : i32
    return %arg0, %c0_i32 : i32, i32
  }
  func.func @transform_2(%arg0: i32) -> (i32, i32) {
    %c0_i32 = arith.constant 0 : i32
    %c0_i32_0 = arith.constant 0 : i32
    %c0_i32_1 = arith.constant 0 : i32
    return %c0_i32, %c0_i32_0 : i32, i32
  }
  func.func @transform_3(%arg0: i32) -> (i32, i32) {
    %c0_i32 = arith.constant 0 : i32
    %c0_i32_0 = arith.constant 0 : i32
    return %arg0, %c0_i32 : i32, i32
  }
  func.func @transform_4(%arg0: i32) -> (i32, i32) {
    %c0_i32 = arith.constant 0 : i32
    %c0_i32_0 = arith.constant 0 : i32
    %c0_i32_1 = arith.constant 0 : i32
    return %c0_i32, %c0_i32_0 : i32, i32
  }
  func.func @transform_5(%arg0: i32) -> (i32, i32) {
    %c0_i32 = arith.constant 0 : i32
    %c0_i32_0 = arith.constant 0 : i32
    %c0_i32_1 = arith.constant 0 : i32
    return %c0_i32, %c0_i32_0 : i32, i32
  }
  func.func @transform_6(%arg0: i32) -> (i32, i32) {
    %c0_i32 = arith.constant 0 : i32
    %c0_i32_0 = arith.constant 0 : i32
    %c0_i32_1 = arith.constant 0 : i32
    return %c0_i32, %c0_i32_0 : i32, i32
  }
  func.func @transform_7(%arg0: i32) -> (i32, i32) {
    %c0_i32 = arith.constant 0 : i32
    %c0_i32_0 = arith.constant 0 : i32
    return %arg0, %c0_i32 : i32, i32
  }
  func.func @transform_8(%arg0: i32) -> (i32, i32) {
    %c0_i32 = arith.constant 0 : i32
    %c0_i32_0 = arith.constant 0 : i32
    return %arg0, %c0_i32 : i32, i32
  }
}

</mosaic_0001>

<llo_original>
// kernel: tpu_custom_call.1
$region0: #{tpu_custom_call.1}
  #allocation0 [shape = 'u32[]', space=smem, size = 0x4, offset = 0x4, fixed_abs, tag = 'smem constant byte address 0x4 - core index']
  #allocation1 [shape = 'u32[144,128]{1,0:T(1,128)}', space=vmem, size = 0x12000, scoped, tag = 'internal scratch']
  %s0 = inlined_call_operand.vmem [shape: f32[256,256], index: 0, kind: input, shape index: {}]
  %s1 = inlined_call_operand.hbm [shape: f32[256,256], index: 1, kind: input, shape index: {}]
  %s2 = inlined_call_operand.vmem [shape: f32[256,32], index: 2, kind: input, shape index: {}]
  %s3 = inlined_call_operand.vmem [shape: f32[256,32], index: 3, kind: input, shape index: {}]
  %s4 = inlined_call_operand.vmem [shape: f32[32,64], index: 4, kind: input, shape index: {}]
  %s5 = inlined_call_operand.vmem [shape: f32[32,64], index: 5, kind: input, shape index: {}]
  %s6 = inlined_call_operand.vmem [shape: f32[1,32], index: 6, kind: input, shape index: {}]
  %s7 = inlined_call_operand.vmem [shape: f32[256,32], index: 7, kind: output, shape index: {0}]
  %s8 = inlined_call_operand.vmem [shape: f32[256,32], index: 8, kind: output, shape index: {1}]
  %9 = xla_tuple %s7, %s8
  %s10 = sld [smem:[#allocation0]]
  $region73: #{tpu_custom_call.1} parent=0
    _
  %s12 = ssub.s32 1, %s10
  %s13 = scalar_select 0, %s12, %s10
  $region1: #{tpu_custom_call.1} parent=0
    #allocation2 [shape = 'u8[262144]{0}', space=vmem, size = 0x40000, scoped, tag = 'input window, operand 1']
    #allocation3 [shape = 's32[2]{0}', space=sflag, size = 0x8, scoped, tag = 'scoped memory for tpu_custom_call.1']
    %14 = vsyncpa [#allocation3], 0
    %s15 = scalar_lea.sflag [#allocation3], 1
    %16 = vsyncpa %s15, 0
    loop: start=0, step=1, limit=4
    $region2: #{tpu_custom_call.1} parent=1 // loop_pre_header
      _
    $region3: #{tpu_custom_call.1} parent=1 // loop_header
      %s18 = sphi 0, %s22
      %p19 = scmp.ge.s32.totalorder %s18, 4
      %s28 = sphi 0, %s30
      %s31 = sphi 0, %s28
      %s32 = sphi 0, %s31
      %s48 = sphi 0, %s32
      %s54 = sphi 0, %s56
      %s57 = sphi 0, %s54
      %s58 = sphi 0, %s57
      %s74 = sphi 0, %s58
      %s78 = sphi 0, %s78
      %s80 = sphi 0, %s78
      %s81 = sphi 0, %s80
      %s95 = sphi 0, %s81
      %s101 = sphi 0, %s103
      %s104 = sphi 0, %s101
      %s105 = sphi 0, %s104
      %s121 = sphi 0, %s105
      %s125 = sphi 0, %s125
      %s127 = sphi 0, %s125
      %s128 = sphi 0, %s127
      %s142 = sphi 0, %s128
      %s146 = sphi 0, %s146
      %s148 = sphi 0, %s146
      %s149 = sphi 0, %s148
      %s163 = sphi 0, %s149
      %s167 = sphi 0, %s167
      %s169 = sphi 0, %s167
      %s170 = sphi 0, %s169
      %s184 = sphi 0, %s170
      %s190 = sphi 0, %s192
      %s193 = sphi 0, %s190
      %s194 = sphi 0, %s193
      %s210 = sphi 0, %s194
      %s216 = sphi 0, %s218
      %s219 = sphi 0, %s216
      %s220 = sphi 0, %s219
      %s236 = sphi 0, %s220
    $region4: #{tpu_custom_call.1} parent=1 // loop_header_branch
      %21 = sbr.rel (%p19) target = $region8
    $region5: #{tpu_custom_call.1} parent=1 // loop_body
      %s23 = ssub.s32 %s18, 1
      %s24 = ssub.s32 %s18, 2
      %s25 = sadd.s32 %s18, 1
      %s26 = ssub.s32 %s18, %s25
      %p27 = scmp.eq.s32.totalorder %s26, 0
      %s29 = sadd.s32 %s28, 1
      %s30 = scalar_select %p27, %s28, %s29
      %p33 = pneg %p27
      %p34 = scmp.eq.s32.totalorder %s18, 1
      %p35 = por %p33, %p34
      %p36 = scmp.ne.s32.totalorder %s28, %s31
      %p37 = scmp.eq.s32.totalorder %s18, 0
      %p38 = por %p36, %p37
      %p39 = scmp.ne.s32.totalorder %s28, %s31
      %p40 = scmp.eq.s32.totalorder %s23, 1
      %p41 = por %p39, %p40
      %p42 = scmp.ne.s32.totalorder %s31, %s32
      %p43 = scmp.eq.s32.totalorder %s23, 0
      %p44 = por %p42, %p43
      %p45 = scmp.ne.s32.totalorder %s31, %s32
      %p46 = scmp.eq.s32.totalorder %s24, 1
      %p47 = por %p45, %p46
      %p49 = scmp.ne.s32.totalorder %s32, %s48
      %p50 = scmp.eq.s32.totalorder %s24, 0
      %p51 = por %p49, %p50
      %s52 = ssub.s32 %s18, %s25
      %p53 = scmp.eq.s32.totalorder %s52, 0
      %s55 = sadd.s32 %s54, 1
      %s56 = scalar_select %p53, %s54, %s55
      %p59 = pneg %p53
      %p60 = scmp.eq.s32.totalorder %s18, 1
      %p61 = por %p59, %p60
      %p62 = scmp.ne.s32.totalorder %s54, %s57
      %p63 = scmp.eq.s32.totalorder %s18, 0
      %p64 = por %p62, %p63
      %p65 = scmp.ne.s32.totalorder %s54, %s57
      %p66 = scmp.eq.s32.totalorder %s23, 1
      %p67 = por %p65, %p66
      %p68 = scmp.ne.s32.totalorder %s57, %s58
      %p69 = scmp.eq.s32.totalorder %s23, 0
      %p70 = por %p68, %p69
      %p71 = scmp.ne.s32.totalorder %s57, %s58
      %p72 = scmp.eq.s32.totalorder %s24, 1
      %p73 = por %p71, %p72
      %p75 = scmp.ne.s32.totalorder %s58, %s74
      %p76 = scmp.eq.s32.totalorder %s24, 0
      %p77 = por %p75, %p76
      %s79 = sadd.s32 %s78, 1
      %p82 = scmp.eq.s32.totalorder %s18, 1
      %p83 = scmp.ne.s32.totalorder %s78, %s80
      %p84 = scmp.eq.s32.totalorder %s18, 0
      %p85 = por %p83, %p84
      %p86 = scmp.ne.s32.totalorder %s78, %s80
      %p87 = scmp.eq.s32.totalorder %s23, 1
      %p88 = por %p86, %p87
      %p89 = scmp.ne.s32.totalorder %s80, %s81
      %p90 = scmp.eq.s32.totalorder %s23, 0
      %p91 = por %p89, %p90
      %p92 = scmp.ne.s32.totalorder %s80, %s81
      %p93 = scmp.eq.s32.totalorder %s24, 1
      %p94 = por %p92, %p93
      %p96 = scmp.ne.s32.totalorder %s81, %s95
      %p97 = scmp.eq.s32.totalorder %s24, 0
      %p98 = por %p96, %p97
      %s99 = ssub.s32 %s18, %s25
      %p100 = scmp.eq.s32.totalorder %s99, 0
      %s102 = sadd.s32 %s101, 1
      %s103 = scalar_select %p100, %s101, %s102
      %p106 = pneg %p100
      %p107 = scmp.eq.s32.totalorder %s18, 1
      %p108 = por %p106, %p107
      %p109 = scmp.ne.s32.totalorder %s101, %s104
      %p110 = scmp.eq.s32.totalorder %s18, 0
      %p111 = por %p109, %p110
      %p112 = scmp.ne.s32.totalorder %s101, %s104
      %p113 = scmp.eq.s32.totalorder %s23, 1
      %p114 = por %p112, %p113
      %p115 = scmp.ne.s32.totalorder %s104, %s105
      %p116 = scmp.eq.s32.totalorder %s23, 0
      %p117 = por %p115, %p116
      %p118 = scmp.ne.s32.totalorder %s104, %s105
      %p119 = scmp.eq.s32.totalorder %s24, 1
      %p120 = por %p118, %p119
      %p122 = scmp.ne.s32.totalorder %s105, %s121
      %p123 = scmp.eq.s32.totalorder %s24, 0
      %p124 = por %p122, %p123
      %s126 = sadd.s32 %s125, 1
      %p129 = scmp.eq.s32.totalorder %s18, 1
      %p130 = scmp.ne.s32.totalorder %s125, %s127
      %p131 = scmp.eq.s32.totalorder %s18, 0
      %p132 = por %p130, %p131
      %p133 = scmp.ne.s32.totalorder %s125, %s127
      %p134 = scmp.eq.s32.totalorder %s23, 1
      %p135 = por %p133, %p134
      %p136 = scmp.ne.s32.totalorder %s127, %s128
      %p137 = scmp.eq.s32.totalorder %s23, 0
      %p138 = por %p136, %p137
      %p139 = scmp.ne.s32.totalorder %s127, %s128
      %p140 = scmp.eq.s32.totalorder %s24, 1
      %p141 = por %p139, %p140
      %p143 = scmp.ne.s32.totalorder %s128, %s142
      %p144 = scmp.eq.s32.totalorder %s24, 0
      %p145 = por %p143, %p144
      %s147 = sadd.s32 %s146, 1
      %p150 = scmp.eq.s32.totalorder %s18, 1
      %p151 = scmp.ne.s32.totalorder %s146, %s148
      %p152 = scmp.eq.s32.totalorder %s18, 0
      %p153 = por %p151, %p152
      %p154 = scmp.ne.s32.totalorder %s146, %s148
      %p155 = scmp.eq.s32.totalorder %s23, 1
      %p156 = por %p154, %p155
      %p157 = scmp.ne.s32.totalorder %s148, %s149
      %p158 = scmp.eq.s32.totalorder %s23, 0
      %p159 = por %p157, %p158
      %p160 = scmp.ne.s32.totalorder %s148, %s149
      %p161 = scmp.eq.s32.totalorder %s24, 1
      %p162 = por %p160, %p161
      %p164 = scmp.ne.s32.totalorder %s149, %s163
      %p165 = scmp.eq.s32.totalorder %s24, 0
      %p166 = por %p164, %p165
      %s168 = sadd.s32 %s167, 1
      %p171 = scmp.eq.s32.totalorder %s18, 1
      %p172 = scmp.ne.s32.totalorder %s167, %s169
      %p173 = scmp.eq.s32.totalorder %s18, 0
      %p174 = por %p172, %p173
      %p175 = scmp.ne.s32.totalorder %s167, %s169
      %p176 = scmp.eq.s32.totalorder %s23, 1
      %p177 = por %p175, %p176
      %p178 = scmp.ne.s32.totalorder %s169, %s170
      %p179 = scmp.eq.s32.totalorder %s23, 0
      %p180 = por %p178, %p179
      %p181 = scmp.ne.s32.totalorder %s169, %s170
      %p182 = scmp.eq.s32.totalorder %s24, 1
      %p183 = por %p181, %p182
      %p185 = scmp.ne.s32.totalorder %s170, %s184
      %p186 = scmp.eq.s32.totalorder %s24, 0
      %p187 = por %p185, %p186
      %s188 = ssub.s32 %s18, %s25
      %p189 = scmp.eq.s32.totalorder %s188, 0
      %s191 = sadd.s32 %s190, 1
      %s192 = scalar_select %p189, %s190, %s191
      %p195 = pneg %p189
      %p196 = scmp.eq.s32.totalorder %s18, 1
      %p197 = por %p195, %p196
      %p198 = scmp.ne.s32.totalorder %s190, %s193
      %p199 = scmp.eq.s32.totalorder %s18, 0
      %p200 = por %p198, %p199
      %p201 = scmp.ne.s32.totalorder %s190, %s193
      %p202 = scmp.eq.s32.totalorder %s23, 1
      %p203 = por %p201, %p202
      %p204 = scmp.ne.s32.totalorder %s193, %s194
      %p205 = scmp.eq.s32.totalorder %s23, 0
      %p206 = por %p204, %p205
      %p207 = scmp.ne.s32.totalorder %s193, %s194
      %p208 = scmp.eq.s32.totalorder %s24, 1
      %p209 = por %p207, %p208
      %p211 = scmp.ne.s32.totalorder %s194, %s210
      %p212 = scmp.eq.s32.totalorder %s24, 0
      %p213 = por %p211, %p212
      %s214 = ssub.s32 %s18, %s25
      %p215 = scmp.eq.s32.totalorder %s214, 0
      %s217 = sadd.s32 %s216, 1
      %s218 = scalar_select %p215, %s216, %s217
      %p221 = pneg %p215
      %p222 = scmp.eq.s32.totalorder %s18, 1
      %p223 = por %p221, %p222
      %p224 = scmp.ne.s32.totalorder %s216, %s219
      %p225 = scmp.eq.s32.totalorder %s18, 0
      %p226 = por %p224, %p225
      %p227 = scmp.ne.s32.totalorder %s216, %s219
      %p228 = scmp.eq.s32.totalorder %s23, 1
      %p229 = por %p227, %p228
      %p230 = scmp.ne.s32.totalorder %s219, %s220
      %p231 = scmp.eq.s32.totalorder %s23, 0
      %p232 = por %p230, %p231
      %p233 = scmp.ne.s32.totalorder %s219, %s220
      %p234 = scmp.eq.s32.totalorder %s24, 1
      %p235 = por %p233, %p234
      %p237 = scmp.ne.s32.totalorder %s220, %s236
      %p238 = scmp.eq.s32.totalorder %s24, 0
      %p239 = por %p237, %p238
      %p240 = scmp.le.s32.totalorder 1, %s18
      %p241 = scmp.lt.s32.totalorder %s18, 3
      %p242 = pnand %p240, %p241
      %p243 = pneg %p242
      // Predicated region
      $region9: #{tpu_custom_call.1} parent=5 // pred_check
        _
      $region10: #{tpu_custom_call.1} parent=5 // pred_check_branch
        %245 = sbr.rel (%p242) target = $region12
      $region11: #{tpu_custom_call.1} parent=5 // pred_region
        %s246 = ssub.s32 %s18, 1
        // Predicated region
        $region13: #{tpu_custom_call.1} parent=11 // pred_check
          %p247 = pneg %p91
        $region14: #{tpu_custom_call.1} parent=11 // pred_check_branch
          %249 = sbr.rel (%p247) target = $region16
        $region15: #{tpu_custom_call.1} parent=11 // pred_region
          _
        $region16: #{tpu_custom_call.1} parent=11 // pred_fallthru
          _
        // Predicated region
        $region17: #{tpu_custom_call.1} parent=11 // pred_check
          %p250 = pneg %p138
        $region18: #{tpu_custom_call.1} parent=11 // pred_check_branch
          %252 = sbr.rel (%p250) target = $region20
        $region19: #{tpu_custom_call.1} parent=11 // pred_region
          _
        $region20: #{tpu_custom_call.1} parent=11 // pred_fallthru
          _
        // Predicated region
        $region21: #{tpu_custom_call.1} parent=11 // pred_check
          %p253 = pneg %p159
        $region22: #{tpu_custom_call.1} parent=11 // pred_check_branch
          %255 = sbr.rel (%p253) target = $region24
        $region23: #{tpu_custom_call.1} parent=11 // pred_region
          _
        $region24: #{tpu_custom_call.1} parent=11 // pred_fallthru
          _
        // Predicated region
        $region25: #{tpu_custom_call.1} parent=11 // pred_check
          %p256 = pneg %p180
        $region26: #{tpu_custom_call.1} parent=11 // pred_check_branch
          %258 = sbr.rel (%p256) target = $region28
        $region27: #{tpu_custom_call.1} parent=11 // pred_region
          _
        $region28: #{tpu_custom_call.1} parent=11 // pred_fallthru
          _
      $region12: #{tpu_custom_call.1} parent=5 // pred_fallthru
        _
      %p259 = scmp.lt.s32.totalorder %s18, 2
      // Predicated region
      $region29: #{tpu_custom_call.1} parent=5 // pred_check
        %p260 = pneg %p259
      $region30: #{tpu_custom_call.1} parent=5 // pred_check_branch
        %262 = sbr.rel (%p260) target = $region32
      $region31: #{tpu_custom_call.1} parent=5 // pred_region
        // Predicated region
        $region33: #{tpu_custom_call.1} parent=31 // pred_check
          %p263 = pneg %p38
        $region34: #{tpu_custom_call.1} parent=31 // pred_check_branch
          %265 = sbr.rel (%p263) target = $region36
        $region35: #{tpu_custom_call.1} parent=31 // pred_region
          %s266 = smul.u32 16, %s18
          %p267 = scmp.lt.s32.totalorder %s266, 31
          %s268 = scalar_select %p267, %s266, 31
          %s269 = smul.addr %s268, 2
          %s270 = smul.addr %s269, 8
          %s271 = scalar_lea.vmem %s0, %s270
          %s272 = smul.u32 16, %s18
        $region36: #{tpu_custom_call.1} parent=31 // pred_fallthru
          _
        // Predicated region
        $region37: #{tpu_custom_call.1} parent=31 // pred_check
          %p273 = pneg %p64
        $region38: #{tpu_custom_call.1} parent=31 // pred_check_branch
          %275 = sbr.rel (%p273) target = $region40
        $region39: #{tpu_custom_call.1} parent=31 // pred_region
          %s276 = sand.u32 %s54, 1
          %s277 = scalar_lea.sflag [#allocation3], %s276
          %s278 = sand.u32 %s54, 1
          %s279 = smul.addr %s278, 256
          %s280 = scalar_lea.vmem [#allocation2], %s279
          %s281 = smul.u32 16, %s18
          %s283 = ssub.s32 4096, 4096
          %284 = vsyncadd %s277, %s283
          %s285 = smul.addr %s281, 2
          %s286 = smul.addr %s285, 128
          %s287 = scalar_lea.hbm %s1, %s286
          %s288 = sshll.u32 %s280, 4
          %s289 = int_to_ptr.vmem [resolvable:$true] %s288
          %294 = dma.hbm_to_vmem [thread:$0]  %s287, 4096, %s289, %s277, 256, 256, 16
        $region40: #{tpu_custom_call.1} parent=31 // pred_fallthru
          _
        // Predicated region
        $region41: #{tpu_custom_call.1} parent=31 // pred_check
          %p295 = pneg %p111
        $region42: #{tpu_custom_call.1} parent=31 // pred_check_branch
          %297 = sbr.rel (%p295) target = $region44
        $region43: #{tpu_custom_call.1} parent=31 // pred_region
          %s298 = smul.u32 16, %s18
          %p299 = scmp.lt.s32.totalorder %s298, 31
          %s300 = scalar_select %p299, %s298, 31
          %s301 = smul.addr %s300, 8
          %s302 = scalar_lea.vmem %s3, %s301
          %s303 = smul.u32 16, %s18
        $region44: #{tpu_custom_call.1} parent=31 // pred_fallthru
          _
      $region32: #{tpu_custom_call.1} parent=5 // pred_fallthru
        _
      %p304 = scmp.le.s32.totalorder 1, %s18
      %p305 = scmp.lt.s32.totalorder %s18, 3
      %p306 = pnand %p304, %p305
      %p307 = pneg %p306
      // Predicated region
      $region45: #{tpu_custom_call.1} parent=5 // pred_check
        _
      $region46: #{tpu_custom_call.1} parent=5 // pred_check_branch
        %309 = sbr.rel (%p306) target = $region48
      $region47: #{tpu_custom_call.1} parent=5 // pred_region
        %s310 = ssub.s32 %s18, 1
        %s311 = sand.u32 %s57, 1
        %s312 = scalar_lea.sflag [#allocation3], %s311
        %s313 = sand.u32 %s57, 1
        %s314 = smul.addr %s313, 256
        %s315 = scalar_lea.vmem [#allocation2], %s314
        // Predicated region
        $region49: #{tpu_custom_call.1} parent=47 // pred_check
          %p316 = pneg %p70
        $region50: #{tpu_custom_call.1} parent=47 // pred_check_branch
          %318 = sbr.rel (%p316) target = $region52
        $region51: #{tpu_custom_call.1} parent=47 // pred_region
          %319 = dma.done %s312, 4096
        $region52: #{tpu_custom_call.1} parent=47 // pred_fallthru
          _
        %s320 = smul.u32 16, %s23
        %p321 = scmp.lt.s32.totalorder %s320, 31
        %s322 = scalar_select %p321, %s320, 31
        %s323 = smul.addr %s322, 2
        %s324 = smul.addr %s323, 8
        %s325 = scalar_lea.vmem %s0, %s324
        %p326 = pneg %p44
        %p327 = pneg %p41
        %s328 = sand.u32 %s57, 1
        %s329 = scalar_lea.sflag [#allocation3], %s328
        %s330 = sand.u32 %s57, 1
        %s331 = smul.addr %s330, 256
        %s332 = scalar_lea.vmem [#allocation2], %s331
        %p333 = pneg %p70
        %p334 = pneg %p67
        %p335 = pneg %p91
        %p336 = pneg %p88
        %s337 = smul.u32 16, %s23
        %p338 = scmp.lt.s32.totalorder %s337, 31
        %s339 = scalar_select %p338, %s337, 31
        %s340 = smul.addr %s339, 8
        %s341 = scalar_lea.vmem %s3, %s340
        %p342 = pneg %p117
        %p343 = pneg %p114
        %p344 = pneg %p138
        %p345 = pneg %p135
        %p346 = pneg %p159
        %p347 = pneg %p156
        %p348 = pneg %p180
        %p349 = pneg %p177
        %p350 = pneg %p206
        %p351 = pneg %p203
        %s352 = smul.u32 16, %s23
        %p353 = scmp.lt.s32.totalorder %s352, 31
        %s354 = scalar_select %p353, %s352, 31
        %s355 = smul.addr %s354, 8
        %s356 = scalar_lea.vmem %s7, %s355
        %p357 = pneg %p232
        %p358 = pneg %p229
        %s359 = smul.u32 16, %s23
        %p360 = scmp.lt.s32.totalorder %s359, 31
        %s361 = scalar_select %p360, %s359, 31
        %s362 = smul.addr %s361, 8
        %s363 = scalar_lea.vmem %s8, %s362
        %s364 = smul.u32 16, %s23
        %p365 = scmp.lt.s32.totalorder %s364, 31
        %s366 = scalar_select %p365, %s364, 31
        %s367 = smul.addr %s366, 2
        %s368 = smul.addr %s367, 8
        %s369 = scalar_lea.vmem %s0, %s368
        %s370 = smul.u32 16, %s23
        %s371 = smul.u32 16, %s23
        %s372 = smul.u32 16, %s23
        %p373 = scmp.lt.s32.totalorder %s372, 31
        %s374 = scalar_select %p373, %s372, 31
        %s375 = smul.addr %s374, 8
        %s376 = scalar_lea.vmem %s3, %s375
        %s377 = smul.u32 16, %s23
        %s378 = smul.u32 16, %s23
        %p379 = scmp.lt.s32.totalorder %s378, 31
        %s380 = scalar_select %p379, %s378, 31
        %s381 = smul.addr %s380, 8
        %s382 = scalar_lea.vmem %s7, %s381
        %s383 = smul.u32 16, %s23
        %s384 = smul.u32 16, %s23
        %p385 = scmp.lt.s32.totalorder %s384, 31
        %s386 = scalar_select %p385, %s384, 31
        %s387 = smul.addr %s386, 8
        %s388 = scalar_lea.vmem %s8, %s387
        %s389 = smul.u32 16, %s23
        %v390 = vld [vmem:[%s2] sm:$0xff]
        %v391 = vld [vmem:[%s2 + $0x8] sm:$0xff]
        %v392 = vld [vmem:[%s2 + $0x10] sm:$0xff]
        %v393 = vld [vmem:[%s2 + $0x18] sm:$0xff]
        %v394 = vld [vmem:[%s2 + $0x20] sm:$0xff]
        %v395 = vld [vmem:[%s2 + $0x28] sm:$0xff]
        %v396 = vld [vmem:[%s2 + $0x30] sm:$0xff]
        %v397 = vld [vmem:[%s2 + $0x38] sm:$0xff]
        %v398 = vld [vmem:[%s2 + $0x40] sm:$0xff]
        %v399 = vld [vmem:[%s2 + $0x48] sm:$0xff]
        %v400 = vld [vmem:[%s2 + $0x50] sm:$0xff]
        %v401 = vld [vmem:[%s2 + $0x58] sm:$0xff]
        %v402 = vld [vmem:[%s2 + $0x60] sm:$0xff]
        %v403 = vld [vmem:[%s2 + $0x68] sm:$0xff]
        %v404 = vld [vmem:[%s2 + $0x70] sm:$0xff]
        %v405 = vld [vmem:[%s2 + $0x78] sm:$0xff]
        %v406 = vld [vmem:[%s2 + $0x80] sm:$0xff]
        %v407 = vld [vmem:[%s2 + $0x88] sm:$0xff]
        %v408 = vld [vmem:[%s2 + $0x90] sm:$0xff]
        %v409 = vld [vmem:[%s2 + $0x98] sm:$0xff]
        %v410 = vld [vmem:[%s2 + $0xa0] sm:$0xff]
        %v411 = vld [vmem:[%s2 + $0xa8] sm:$0xff]
        %v412 = vld [vmem:[%s2 + $0xb0] sm:$0xff]
        %v413 = vld [vmem:[%s2 + $0xb8] sm:$0xff]
        %v414 = vld [vmem:[%s2 + $0xc0] sm:$0xff]
        %v415 = vld [vmem:[%s2 + $0xc8] sm:$0xff]
        %v416 = vld [vmem:[%s2 + $0xd0] sm:$0xff]
        %v417 = vld [vmem:[%s2 + $0xd8] sm:$0xff]
        %v418 = vld [vmem:[%s2 + $0xe0] sm:$0xff]
        %v419 = vld [vmem:[%s2 + $0xe8] sm:$0xff]
        %v420 = vld [vmem:[%s2 + $0xf0] sm:$0xff]
        %v421 = vld [vmem:[%s2 + $0xf8] sm:$0xff]
        %v422 = vld [vmem:[%s369] sm:$0xff]
        %v423 = vld [vmem:[%s369 + $0x8] sm:$0xff]
        %v424 = vld [vmem:[%s369 + $0x10] sm:$0xff]
        %v425 = vld [vmem:[%s369 + $0x18] sm:$0xff]
        %v426 = vld [vmem:[%s369 + $0x20] sm:$0xff]
        %v427 = vld [vmem:[%s369 + $0x28] sm:$0xff]
        %v428 = vld [vmem:[%s369 + $0x30] sm:$0xff]
        %v429 = vld [vmem:[%s369 + $0x38] sm:$0xff]
        %v430 = vld [vmem:[%s369 + $0x40] sm:$0xff]
        %v431 = vld [vmem:[%s369 + $0x48] sm:$0xff]
        %v432 = vld [vmem:[%s369 + $0x50] sm:$0xff]
        %v433 = vld [vmem:[%s369 + $0x58] sm:$0xff]
        %v434 = vld [vmem:[%s369 + $0x60] sm:$0xff]
        %v435 = vld [vmem:[%s369 + $0x68] sm:$0xff]
        %v436 = vld [vmem:[%s369 + $0x70] sm:$0xff]
        %v437 = vld [vmem:[%s369 + $0x78] sm:$0xff]
        %v438 = vld [vmem:[%s369 + $0x80] sm:$0xff]
        %v439 = vld [vmem:[%s369 + $0x88] sm:$0xff]
        %v440 = vld [vmem:[%s369 + $0x90] sm:$0xff]
        %v441 = vld [vmem:[%s369 + $0x98] sm:$0xff]
        %v442 = vld [vmem:[%s369 + $0xa0] sm:$0xff]
        %v443 = vld [vmem:[%s369 + $0xa8] sm:$0xff]
        %v444 = vld [vmem:[%s369 + $0xb0] sm:$0xff]
        %v445 = vld [vmem:[%s369 + $0xb8] sm:$0xff]
        %v446 = vld [vmem:[%s369 + $0xc0] sm:$0xff]
        %v447 = vld [vmem:[%s369 + $0xc8] sm:$0xff]
        %v448 = vld [vmem:[%s369 + $0xd0] sm:$0xff]
        %v449 = vld [vmem:[%s369 + $0xd8] sm:$0xff]
        %v450 = vld [vmem:[%s369 + $0xe0] sm:$0xff]
        %v451 = vld [vmem:[%s369 + $0xe8] sm:$0xff]
        %v452 = vld [vmem:[%s369 + $0xf0] sm:$0xff]
        %v453 = vld [vmem:[%s369 + $0xf8] sm:$0xff]
        %454 = vmatprep.subr.mxu0 0.0
        %455 = vmatpush1.msra.mxu0 %v405
        %456 = vmatprep.subr.mxu0 0.0
        %457 = vmatpush1.msra.mxu0 %v404
        %458 = vmatprep.subr.mxu0 0.0
        %459 = vmatpush1.msra.mxu0 %v403
        %460 = vmatprep.subr.mxu0 0.0
        %461 = vmatpush1.msra.mxu0 %v402
        %462 = vmatprep.subr.mxu0 0.0
        %463 = vmatpush1.msra.mxu0 %v401
        %464 = vmatprep.subr.mxu0 0.0
        %465 = vmatpush1.msra.mxu0 %v400
        %466 = vmatprep.subr.mxu0 0.0
        %467 = vmatpush1.msra.mxu0 %v399
        %468 = vmatprep.subr.mxu0 0.0
        %469 = vmatpush1.msra.mxu0 %v398
        %470 = vmatprep.subr.mxu0 0.0
        %471 = vmatpush1.msra.mxu0 %v397
        %472 = vmatprep.subr.mxu0 0.0
        %473 = vmatpush1.msra.mxu0 %v396
        %474 = vmatprep.subr.mxu0 0.0
        %475 = vmatpush1.msra.mxu0 %v395
        %476 = vmatprep.subr.mxu0 0.0
        %477 = vmatpush1.msra.mxu0 %v394
        %478 = vmatprep.subr.mxu0 0.0
        %479 = vmatpush1.msra.mxu0 %v393
        %480 = vmatprep.subr.mxu0 0.0
        %481 = vmatpush1.msra.mxu0 %v392
        %482 = vmatprep.subr.mxu0 0.0
        %483 = vmatpush1.msra.mxu0 %v391
        %484 = vmatprep.subr.mxu0 0.0
        %485 = vmatpush1.msra.mxu0 %v390
        %486 = vmatprep.subr.mxu0 0.0
        %487 = vmatpush2.msra.mxu0 %v421
        %488 = vmatprep.subr.mxu0 0.0
        %489 = vmatpush2.msra.mxu0 %v420
        %490 = vmatprep.subr.mxu0 0.0
        %491 = vmatpush2.msra.mxu0 %v419
        %492 = vmatprep.subr.mxu0 0.0
        %493 = vmatpush2.msra.mxu0 %v418
        %494 = vmatprep.subr.mxu0 0.0
        %495 = vmatpush2.msra.mxu0 %v417
        %496 = vmatprep.subr.mxu0 0.0
        %497 = vmatpush2.msra.mxu0 %v416
        %498 = vmatprep.subr.mxu0 0.0
        %499 = vmatpush2.msra.mxu0 %v415
        %500 = vmatprep.subr.mxu0 0.0
        %501 = vmatpush2.msra.mxu0 %v414
        %502 = vmatprep.subr.mxu0 0.0
        %503 = vmatpush2.msra.mxu0 %v413
        %504 = vmatprep.subr.mxu0 0.0
        %505 = vmatpush2.msra.mxu0 %v412
        %506 = vmatprep.subr.mxu0 0.0
        %507 = vmatpush2.msra.mxu0 %v411
        %508 = vmatprep.subr.mxu0 0.0
        %509 = vmatpush2.msra.mxu0 %v410
        %510 = vmatprep.subr.mxu0 0.0
        %511 = vmatpush2.msra.mxu0 %v409
        %512 = vmatprep.subr.mxu0 0.0
        %513 = vmatpush2.msra.mxu0 %v408
        %514 = vmatprep.subr.mxu0 0.0
        %515 = vmatpush2.msra.mxu0 %v407
        %516 = vmatprep.subr.mxu0 0.0
        %517 = vmatpush2.msra.mxu0 %v406
        %518 = vmatprep.mubr.f32.mxu0 %v423
        %519 = vmatmul.mubr.f32.gmra.mxu0 %v422
        %v520 = vpop.f32.mrf.mxu0
        %v521 = vadd.f32 0.0, %v520
        %v522 = vpop.f32.mrf.mxu0
        %523 = vmatprep.mubr.f32.mxu0 %v425
        %524 = vmatmul.mubr.f32.gmra.mxu0 %v424
        %v525 = vpop.f32.mrf.mxu0
        %v526 = vadd.f32 0.0, %v525
        %v527 = vpop.f32.mrf.mxu0
        %528 = vmatprep.mubr.f32.mxu0 %v427
        %529 = vmatmul.mubr.f32.gmra.mxu0 %v426
        %v530 = vpop.f32.mrf.mxu0
        %v531 = vadd.f32 0.0, %v530
        %v532 = vpop.f32.mrf.mxu0
        %533 = vmatprep.mubr.f32.mxu0 %v429
        %534 = vmatmul.mubr.f32.gmra.mxu0 %v428
        %v535 = vpop.f32.mrf.mxu0
        %v536 = vadd.f32 0.0, %v535
        %v537 = vpop.f32.mrf.mxu0
        %538 = vmatprep.mubr.f32.mxu0 %v431
        %539 = vmatmul.mubr.f32.gmra.mxu0 %v430
        %v540 = vpop.f32.mrf.mxu0
        %v541 = vadd.f32 0.0, %v540
        %v542 = vpop.f32.mrf.mxu0
        %543 = vmatprep.mubr.f32.mxu0 %v433
        %544 = vmatmul.mubr.f32.gmra.mxu0 %v432
        %v545 = vpop.f32.mrf.mxu0
        %v546 = vadd.f32 0.0, %v545
        %v547 = vpop.f32.mrf.mxu0
        %548 = vmatprep.mubr.f32.mxu0 %v435
        %549 = vmatmul.mubr.f32.gmra.mxu0 %v434
        %v550 = vpop.f32.mrf.mxu0
        %v551 = vadd.f32 0.0, %v550
        %v552 = vpop.f32.mrf.mxu0
        %553 = vmatprep.mubr.f32.mxu0 %v437
        %554 = vmatmul.mubr.f32.gmra.mxu0 %v436
        %v555 = vpop.f32.mrf.mxu0
        %v556 = vadd.f32 0.0, %v555
        %v557 = vpop.f32.mrf.mxu0
        %558 = vmatprep.mubr.f32.mxu0 %v439
        %559 = vmatmul.mubr.f32.gmra.mxu0 %v438
        %v560 = vpop.f32.mrf.mxu0
        %v561 = vadd.f32 0.0, %v560
        %v562 = vpop.f32.mrf.mxu0
        %563 = vmatprep.mubr.f32.mxu0 %v441
        %564 = vmatmul.mubr.f32.gmra.mxu0 %v440
        %v565 = vpop.f32.mrf.mxu0
        %v566 = vadd.f32 0.0, %v565
        %v567 = vpop.f32.mrf.mxu0
        %568 = vmatprep.mubr.f32.mxu0 %v443
        %569 = vmatmul.mubr.f32.gmra.mxu0 %v442
        %v570 = vpop.f32.mrf.mxu0
        %v571 = vadd.f32 0.0, %v570
        %v572 = vpop.f32.mrf.mxu0
        %573 = vmatprep.mubr.f32.mxu0 %v445
        %574 = vmatmul.mubr.f32.gmra.mxu0 %v444
        %v575 = vpop.f32.mrf.mxu0
        %v576 = vadd.f32 0.0, %v575
        %v577 = vpop.f32.mrf.mxu0
        %578 = vmatprep.mubr.f32.mxu0 %v447
        %579 = vmatmul.mubr.f32.gmra.mxu0 %v446
        %v580 = vpop.f32.mrf.mxu0
        %v581 = vadd.f32 0.0, %v580
        %v582 = vpop.f32.mrf.mxu0
        %583 = vmatprep.mubr.f32.mxu0 %v449
        %584 = vmatmul.mubr.f32.gmra.mxu0 %v448
        %v585 = vpop.f32.mrf.mxu0
        %v586 = vadd.f32 0.0, %v585
        %v587 = vpop.f32.mrf.mxu0
        %588 = vmatprep.mubr.f32.mxu0 %v451
        %589 = vmatmul.mubr.f32.gmra.mxu0 %v450
        %v590 = vpop.f32.mrf.mxu0
        %v591 = vadd.f32 0.0, %v590
        %v592 = vpop.f32.mrf.mxu0
        %593 = vmatprep.mubr.f32.mxu0 %v453
        %594 = vmatmul.mubr.f32.gmra.mxu0 %v452
        %v595 = vpop.f32.mrf.mxu0
        %v596 = vadd.f32 0.0, %v595
        %v597 = vpop.f32.mrf.mxu0
        %598 = vdwg.mxu0
        %v599 = vld [vmem:[%s315] sm:$0xff]
        %v600 = vld [vmem:[%s315 + $0x8] sm:$0xff]
        %v601 = vld [vmem:[%s315 + $0x10] sm:$0xff]
        %v602 = vld [vmem:[%s315 + $0x18] sm:$0xff]
        %v603 = vld [vmem:[%s315 + $0x20] sm:$0xff]
        %v604 = vld [vmem:[%s315 + $0x28] sm:$0xff]
        %v605 = vld [vmem:[%s315 + $0x30] sm:$0xff]
        %v606 = vld [vmem:[%s315 + $0x38] sm:$0xff]
        %v607 = vld [vmem:[%s315 + $0x40] sm:$0xff]
        %v608 = vld [vmem:[%s315 + $0x48] sm:$0xff]
        %v609 = vld [vmem:[%s315 + $0x50] sm:$0xff]
        %v610 = vld [vmem:[%s315 + $0x58] sm:$0xff]
        %v611 = vld [vmem:[%s315 + $0x60] sm:$0xff]
        %v612 = vld [vmem:[%s315 + $0x68] sm:$0xff]
        %v613 = vld [vmem:[%s315 + $0x70] sm:$0xff]
        %v614 = vld [vmem:[%s315 + $0x78] sm:$0xff]
        %v615 = vld [vmem:[%s315 + $0x80] sm:$0xff]
        %v616 = vld [vmem:[%s315 + $0x88] sm:$0xff]
        %v617 = vld [vmem:[%s315 + $0x90] sm:$0xff]
        %v618 = vld [vmem:[%s315 + $0x98] sm:$0xff]
        %v619 = vld [vmem:[%s315 + $0xa0] sm:$0xff]
        %v620 = vld [vmem:[%s315 + $0xa8] sm:$0xff]
        %v621 = vld [vmem:[%s315 + $0xb0] sm:$0xff]
        %v622 = vld [vmem:[%s315 + $0xb8] sm:$0xff]
        %v623 = vld [vmem:[%s315 + $0xc0] sm:$0xff]
        %v624 = vld [vmem:[%s315 + $0xc8] sm:$0xff]
        %v625 = vld [vmem:[%s315 + $0xd0] sm:$0xff]
        %v626 = vld [vmem:[%s315 + $0xd8] sm:$0xff]
        %v627 = vld [vmem:[%s315 + $0xe0] sm:$0xff]
        %v628 = vld [vmem:[%s315 + $0xe8] sm:$0xff]
        %v629 = vld [vmem:[%s315 + $0xf0] sm:$0xff]
        %v630 = vld [vmem:[%s315 + $0xf8] sm:$0xff]
        %631 = vmatprep.subr.mxu0 0.0
        %632 = vmatpush1.msra.mxu0 %v405
        %633 = vmatprep.subr.mxu0 0.0
        %634 = vmatpush1.msra.mxu0 %v404
        %635 = vmatprep.subr.mxu0 0.0
        %636 = vmatpush1.msra.mxu0 %v403
        %637 = vmatprep.subr.mxu0 0.0
        %638 = vmatpush1.msra.mxu0 %v402
        %639 = vmatprep.subr.mxu0 0.0
        %640 = vmatpush1.msra.mxu0 %v401
        %641 = vmatprep.subr.mxu0 0.0
        %642 = vmatpush1.msra.mxu0 %v400
        %643 = vmatprep.subr.mxu0 0.0
        %644 = vmatpush1.msra.mxu0 %v399
        %645 = vmatprep.subr.mxu0 0.0
        %646 = vmatpush1.msra.mxu0 %v398
        %647 = vmatprep.subr.mxu0 0.0
        %648 = vmatpush1.msra.mxu0 %v397
        %649 = vmatprep.subr.mxu0 0.0
        %650 = vmatpush1.msra.mxu0 %v396
        %651 = vmatprep.subr.mxu0 0.0
        %652 = vmatpush1.msra.mxu0 %v395
        %653 = vmatprep.subr.mxu0 0.0
        %654 = vmatpush1.msra.mxu0 %v394
        %655 = vmatprep.subr.mxu0 0.0
        %656 = vmatpush1.msra.mxu0 %v393
        %657 = vmatprep.subr.mxu0 0.0
        %658 = vmatpush1.msra.mxu0 %v392
        %659 = vmatprep.subr.mxu0 0.0
        %660 = vmatpush1.msra.mxu0 %v391
        %661 = vmatprep.subr.mxu0 0.0
        %662 = vmatpush1.msra.mxu0 %v390
        %663 = vmatprep.subr.mxu0 0.0
        %664 = vmatpush2.msra.mxu0 %v421
        %665 = vmatprep.subr.mxu0 0.0
        %666 = vmatpush2.msra.mxu0 %v420
        %667 = vmatprep.subr.mxu0 0.0
        %668 = vmatpush2.msra.mxu0 %v419
        %669 = vmatprep.subr.mxu0 0.0
        %670 = vmatpush2.msra.mxu0 %v418
        %671 = vmatprep.subr.mxu0 0.0
        %672 = vmatpush2.msra.mxu0 %v417
        %673 = vmatprep.subr.mxu0 0.0
        %674 = vmatpush2.msra.mxu0 %v416
        %675 = vmatprep.subr.mxu0 0.0
        %676 = vmatpush2.msra.mxu0 %v415
        %677 = vmatprep.subr.mxu0 0.0
        %678 = vmatpush2.msra.mxu0 %v414
        %679 = vmatprep.subr.mxu0 0.0
        %680 = vmatpush2.msra.mxu0 %v413
        %681 = vmatprep.subr.mxu0 0.0
        %682 = vmatpush2.msra.mxu0 %v412
        %683 = vmatprep.subr.mxu0 0.0
        %684 = vmatpush2.msra.mxu0 %v411
        %685 = vmatprep.subr.mxu0 0.0
        %686 = vmatpush2.msra.mxu0 %v410
        %687 = vmatprep.subr.mxu0 0.0
        %688 = vmatpush2.msra.mxu0 %v409
        %689 = vmatprep.subr.mxu0 0.0
        %690 = vmatpush2.msra.mxu0 %v408
        %691 = vmatprep.subr.mxu0 0.0
        %692 = vmatpush2.msra.mxu0 %v407
        %693 = vmatprep.subr.mxu0 0.0
        %694 = vmatpush2.msra.mxu0 %v406
        %695 = vmatprep.mubr.f32.mxu0 %v600
        %696 = vmatmul.mubr.f32.gmra.mxu0 %v599
        %v697 = vpop.f32.mrf.mxu0
        %v698 = vadd.f32 0.0, %v697
        %v699 = vpop.f32.mrf.mxu0
        %700 = vmatprep.mubr.f32.mxu0 %v602
        %701 = vmatmul.mubr.f32.gmra.mxu0 %v601
        %v702 = vpop.f32.mrf.mxu0
        %v703 = vadd.f32 0.0, %v702
        %v704 = vpop.f32.mrf.mxu0
        %705 = vmatprep.mubr.f32.mxu0 %v604
        %706 = vmatmul.mubr.f32.gmra.mxu0 %v603
        %v707 = vpop.f32.mrf.mxu0
        %v708 = vadd.f32 0.0, %v707
        %v709 = vpop.f32.mrf.mxu0
        %710 = vmatprep.mubr.f32.mxu0 %v606
        %711 = vmatmul.mubr.f32.gmra.mxu0 %v605
        %v712 = vpop.f32.mrf.mxu0
        %v713 = vadd.f32 0.0, %v712
        %v714 = vpop.f32.mrf.mxu0
        %715 = vmatprep.mubr.f32.mxu0 %v608
        %716 = vmatmul.mubr.f32.gmra.mxu0 %v607
        %v717 = vpop.f32.mrf.mxu0
        %v718 = vadd.f32 0.0, %v717
        %v719 = vpop.f32.mrf.mxu0
        %720 = vmatprep.mubr.f32.mxu0 %v610
        %721 = vmatmul.mubr.f32.gmra.mxu0 %v609
        %v722 = vpop.f32.mrf.mxu0
        %v723 = vadd.f32 0.0, %v722
        %v724 = vpop.f32.mrf.mxu0
        %725 = vmatprep.mubr.f32.mxu0 %v612
        %726 = vmatmul.mubr.f32.gmra.mxu0 %v611
        %v727 = vpop.f32.mrf.mxu0
        %v728 = vadd.f32 0.0, %v727
        %v729 = vpop.f32.mrf.mxu0
        %730 = vmatprep.mubr.f32.mxu0 %v614
        %731 = vmatmul.mubr.f32.gmra.mxu0 %v613
        %v732 = vpop.f32.mrf.mxu0
        %v733 = vadd.f32 0.0, %v732
        %v734 = vpop.f32.mrf.mxu0
        %735 = vmatprep.mubr.f32.mxu0 %v616
        %736 = vmatmul.mubr.f32.gmra.mxu0 %v615
        %v737 = vpop.f32.mrf.mxu0
        %v738 = vadd.f32 0.0, %v737
        %v739 = vpop.f32.mrf.mxu0
        %740 = vmatprep.mubr.f32.mxu0 %v618
        %741 = vmatmul.mubr.f32.gmra.mxu0 %v617
        %v742 = vpop.f32.mrf.mxu0
        %v743 = vadd.f32 0.0, %v742
        %v744 = vpop.f32.mrf.mxu0
        %745 = vmatprep.mubr.f32.mxu0 %v620
        %746 = vmatmul.mubr.f32.gmra.mxu0 %v619
        %v747 = vpop.f32.mrf.mxu0
        %v748 = vadd.f32 0.0, %v747
        %v749 = vpop.f32.mrf.mxu0
        %750 = vmatprep.mubr.f32.mxu0 %v622
        %751 = vmatmul.mubr.f32.gmra.mxu0 %v621
        %v752 = vpop.f32.mrf.mxu0
        %v753 = vadd.f32 0.0, %v752
        %v754 = vpop.f32.mrf.mxu0
        %755 = vmatprep.mubr.f32.mxu0 %v624
        %756 = vmatmul.mubr.f32.gmra.mxu0 %v623
        %v757 = vpop.f32.mrf.mxu0
        %v758 = vadd.f32 0.0, %v757
        %v759 = vpop.f32.mrf.mxu0
        %760 = vmatprep.mubr.f32.mxu0 %v626
        %761 = vmatmul.mubr.f32.gmra.mxu0 %v625
        %v762 = vpop.f32.mrf.mxu0
        %v763 = vadd.f32 0.0, %v762
        %v764 = vpop.f32.mrf.mxu0
        %765 = vmatprep.mubr.f32.mxu0 %v628
        %766 = vmatmul.mubr.f32.gmra.mxu0 %v627
        %v767 = vpop.f32.mrf.mxu0
        %v768 = vadd.f32 0.0, %v767
        %v769 = vpop.f32.mrf.mxu0
        %770 = vmatprep.mubr.f32.mxu0 %v630
        %771 = vmatmul.mubr.f32.gmra.mxu0 %v629
        %v772 = vpop.f32.mrf.mxu0
        %v773 = vadd.f32 0.0, %v772
        %v774 = vpop.f32.mrf.mxu0
        %775 = vdwg.mxu0
        %v776 = vld [vmem:[%s376] sm:$0xff]
        %v777 = vld [vmem:[%s376 + $0x8] sm:$0xff]
        %v778 = vld [vmem:[%s376 + $0x10] sm:$0xff]
        %v779 = vld [vmem:[%s376 + $0x18] sm:$0xff]
        %v780 = vld [vmem:[%s376 + $0x20] sm:$0xff]
        %v781 = vld [vmem:[%s376 + $0x28] sm:$0xff]
        %v782 = vld [vmem:[%s376 + $0x30] sm:$0xff]
        %v783 = vld [vmem:[%s376 + $0x38] sm:$0xff]
        %v784 = vld [vmem:[%s376 + $0x40] sm:$0xff]
        %v785 = vld [vmem:[%s376 + $0x48] sm:$0xff]
        %v786 = vld [vmem:[%s376 + $0x50] sm:$0xff]
        %v787 = vld [vmem:[%s376 + $0x58] sm:$0xff]
        %v788 = vld [vmem:[%s376 + $0x60] sm:$0xff]
        %v789 = vld [vmem:[%s376 + $0x68] sm:$0xff]
        %v790 = vld [vmem:[%s376 + $0x70] sm:$0xff]
        %v791 = vld [vmem:[%s376 + $0x78] sm:$0xff]
        %v792 = vld [vmem:[%s4] sm:$0xff]
        %v793 = vld [vmem:[%s4 + $0x8] sm:$0xff]
        %v794 = vld [vmem:[%s4 + $0x10] sm:$0xff]
        %v795 = vld [vmem:[%s4 + $0x18] sm:$0xff]
        %v796 = vld [vmem:[%s5] sm:$0xff]
        %v797 = vld [vmem:[%s5 + $0x8] sm:$0xff]
        %v798 = vld [vmem:[%s5 + $0x10] sm:$0xff]
        %v799 = vld [vmem:[%s5 + $0x18] sm:$0xff]
        %vm800 = vcmask 261120
        %v802 = vsel %vm800, %v521, 0
        %v805 = vsel %vm800, %v526, 0
        %v808 = vsel %vm800, %v531, 0
        %v811 = vsel %vm800, %v536, 0
        %v814 = vsel %vm800, %v541, 0
        %v817 = vsel %vm800, %v546, 0
        %v820 = vsel %vm800, %v551, 0
        %v823 = vsel %vm800, %v556, 0
        %v826 = vsel %vm800, %v561, 0
        %v829 = vsel %vm800, %v566, 0
        %v832 = vsel %vm800, %v571, 0
        %v835 = vsel %vm800, %v576, 0
        %v838 = vsel %vm800, %v581, 0
        %v841 = vsel %vm800, %v586, 0
        %v844 = vsel %vm800, %v591, 0
        %v847 = vsel %vm800, %v596, 0
        %849 = vmatprep.subr.mxu0 0.0
        %850 = vmatpush1.msra.mxu0 0.0
        %851 = vmatprep.subr.mxu0 0.0
        %852 = vmatpush1.msra.mxu0 0.0
        %853 = vmatprep.subr.mxu0 0.0
        %854 = vmatpush1.msra.mxu0 0.0
        %855 = vmatprep.subr.mxu0 0.0
        %856 = vmatpush1.msra.mxu0 0.0
        %857 = vmatprep.subr.mxu0 0.0
        %858 = vmatpush1.msra.mxu0 0.0
        %859 = vmatprep.subr.mxu0 0.0
        %860 = vmatpush1.msra.mxu0 0.0
        %861 = vmatprep.subr.mxu0 0.0
        %862 = vmatpush1.msra.mxu0 0.0
        %863 = vmatprep.subr.mxu0 0.0
        %864 = vmatpush1.msra.mxu0 0.0
        %865 = vmatprep.subr.mxu0 0.0
        %866 = vmatpush1.msra.mxu0 0.0
        %867 = vmatprep.subr.mxu0 0.0
        %868 = vmatpush1.msra.mxu0 0.0
        %869 = vmatprep.subr.mxu0 0.0
        %870 = vmatpush1.msra.mxu0 0.0
        %871 = vmatprep.subr.mxu0 0.0
        %872 = vmatpush1.msra.mxu0 0.0
        %873 = vmatprep.subr.mxu0 0.0
        %874 = vmatpush1.msra.mxu0 %v799
        %875 = vmatprep.subr.mxu0 0.0
        %876 = vmatpush1.msra.mxu0 %v798
        %877 = vmatprep.subr.mxu0 0.0
        %878 = vmatpush1.msra.mxu0 %v797
        %879 = vmatprep.subr.mxu0 0.0
        %880 = vmatpush1.msra.mxu0 %v796
        %881 = vmatprep.subr.mxu0 0.0
        %882 = vmatpush2.msra.mxu0 0.0
        %883 = vmatprep.subr.mxu0 0.0
        %884 = vmatpush2.msra.mxu0 0.0
        %885 = vmatprep.subr.mxu0 0.0
        %886 = vmatpush2.msra.mxu0 0.0
        %887 = vmatprep.subr.mxu0 0.0
        %888 = vmatpush2.msra.mxu0 0.0
        %889 = vmatprep.subr.mxu0 0.0
        %890 = vmatpush2.msra.mxu0 0.0
        %891 = vmatprep.subr.mxu0 0.0
        %892 = vmatpush2.msra.mxu0 0.0
        %893 = vmatprep.subr.mxu0 0.0
        %894 = vmatpush2.msra.mxu0 0.0
        %895 = vmatprep.subr.mxu0 0.0
        %896 = vmatpush2.msra.mxu0 0.0
        %897 = vmatprep.subr.mxu0 0.0
        %898 = vmatpush2.msra.mxu0 0.0
        %899 = vmatprep.subr.mxu0 0.0
        %900 = vmatpush2.msra.mxu0 0.0
        %901 = vmatprep.subr.mxu0 0.0
        %902 = vmatpush2.msra.mxu0 0.0
        %903 = vmatprep.subr.mxu0 0.0
        %904 = vmatpush2.msra.mxu0 0.0
        %905 = vmatprep.subr.mxu0 0.0
        %906 = vmatpush2.msra.mxu0 0.0
        %907 = vmatprep.subr.mxu0 0.0
        %908 = vmatpush2.msra.mxu0 0.0
        %909 = vmatprep.subr.mxu0 0.0
        %910 = vmatpush2.msra.mxu0 0.0
        %911 = vmatprep.subr.mxu0 0.0
        %912 = vmatpush2.msra.mxu0 0.0
        %913 = vmatprep.mubr.f32.mxu0 0.0
        %914 = vmatmul.mubr.f32.gmra.mxu0 %v802
        %v915 = vpop.f32.mrf.mxu0
        %v916 = vadd.f32 0.0, %v915
        %v917 = vpop.f32.mrf.mxu0
        %918 = vmatprep.mubr.f32.mxu0 0.0
        %919 = vmatmul.mubr.f32.gmra.mxu0 %v805
        %v920 = vpop.f32.mrf.mxu0
        %v921 = vadd.f32 0.0, %v920
        %v922 = vpop.f32.mrf.mxu0
        %923 = vmatprep.mubr.f32.mxu0 0.0
        %924 = vmatmul.mubr.f32.gmra.mxu0 %v808
        %v925 = vpop.f32.mrf.mxu0
        %v926 = vadd.f32 0.0, %v925
        %v927 = vpop.f32.mrf.mxu0
        %928 = vmatprep.mubr.f32.mxu0 0.0
        %929 = vmatmul.mubr.f32.gmra.mxu0 %v811
        %v930 = vpop.f32.mrf.mxu0
        %v931 = vadd.f32 0.0, %v930
        %v932 = vpop.f32.mrf.mxu0
        %933 = vmatprep.mubr.f32.mxu0 0.0
        %934 = vmatmul.mubr.f32.gmra.mxu0 %v814
        %v935 = vpop.f32.mrf.mxu0
        %v936 = vadd.f32 0.0, %v935
        %v937 = vpop.f32.mrf.mxu0
        %938 = vmatprep.mubr.f32.mxu0 0.0
        %939 = vmatmul.mubr.f32.gmra.mxu0 %v817
        %v940 = vpop.f32.mrf.mxu0
        %v941 = vadd.f32 0.0, %v940
        %v942 = vpop.f32.mrf.mxu0
        %943 = vmatprep.mubr.f32.mxu0 0.0
        %944 = vmatmul.mubr.f32.gmra.mxu0 %v820
        %v945 = vpop.f32.mrf.mxu0
        %v946 = vadd.f32 0.0, %v945
        %v947 = vpop.f32.mrf.mxu0
        %948 = vmatprep.mubr.f32.mxu0 0.0
        %949 = vmatmul.mubr.f32.gmra.mxu0 %v823
        %v950 = vpop.f32.mrf.mxu0
        %v951 = vadd.f32 0.0, %v950
        %v952 = vpop.f32.mrf.mxu0
        %953 = vmatprep.mubr.f32.mxu0 0.0
        %954 = vmatmul.mubr.f32.gmra.mxu0 %v826
        %v955 = vpop.f32.mrf.mxu0
        %v956 = vadd.f32 0.0, %v955
        %v957 = vpop.f32.mrf.mxu0
        %958 = vmatprep.mubr.f32.mxu0 0.0
        %959 = vmatmul.mubr.f32.gmra.mxu0 %v829
        %v960 = vpop.f32.mrf.mxu0
        %v961 = vadd.f32 0.0, %v960
        %v962 = vpop.f32.mrf.mxu0
        %963 = vmatprep.mubr.f32.mxu0 0.0
        %964 = vmatmul.mubr.f32.gmra.mxu0 %v832
        %v965 = vpop.f32.mrf.mxu0
        %v966 = vadd.f32 0.0, %v965
        %v967 = vpop.f32.mrf.mxu0
        %968 = vmatprep.mubr.f32.mxu0 0.0
        %969 = vmatmul.mubr.f32.gmra.mxu0 %v835
        %v970 = vpop.f32.mrf.mxu0
        %v971 = vadd.f32 0.0, %v970
        %v972 = vpop.f32.mrf.mxu0
        %973 = vmatprep.mubr.f32.mxu0 0.0
        %974 = vmatmul.mubr.f32.gmra.mxu0 %v838
        %v975 = vpop.f32.mrf.mxu0
        %v976 = vadd.f32 0.0, %v975
        %v977 = vpop.f32.mrf.mxu0
        %978 = vmatprep.mubr.f32.mxu0 0.0
        %979 = vmatmul.mubr.f32.gmra.mxu0 %v841
        %v980 = vpop.f32.mrf.mxu0
        %v981 = vadd.f32 0.0, %v980
        %v982 = vpop.f32.mrf.mxu0
        %983 = vmatprep.mubr.f32.mxu0 0.0
        %984 = vmatmul.mubr.f32.gmra.mxu0 %v844
        %v985 = vpop.f32.mrf.mxu0
        %v986 = vadd.f32 0.0, %v985
        %v987 = vpop.f32.mrf.mxu0
        %988 = vmatprep.mubr.f32.mxu0 0.0
        %989 = vmatmul.mubr.f32.gmra.mxu0 %v847
        %v990 = vpop.f32.mrf.mxu0
        %v991 = vadd.f32 0.0, %v990
        %v992 = vpop.f32.mrf.mxu0
        %993 = vdwg.mxu0
        %v995 = vsel %vm800, %v776, 0
        %v998 = vsel %vm800, %v777, 0
        %v1001 = vsel %vm800, %v778, 0
        %v1004 = vsel %vm800, %v779, 0
        %v1007 = vsel %vm800, %v780, 0
        %v1010 = vsel %vm800, %v781, 0
        %v1013 = vsel %vm800, %v782, 0
        %v1016 = vsel %vm800, %v783, 0
        %v1019 = vsel %vm800, %v784, 0
        %v1022 = vsel %vm800, %v785, 0
        %v1025 = vsel %vm800, %v786, 0
        %v1028 = vsel %vm800, %v787, 0
        %v1031 = vsel %vm800, %v788, 0
        %v1034 = vsel %vm800, %v789, 0
        %v1037 = vsel %vm800, %v790, 0
        %v1040 = vsel %vm800, %v791, 0
        %1042 = vmatprep.subr.mxu0 0.0
        %1043 = vmatpush1.msra.mxu0 0.0
        %1044 = vmatprep.subr.mxu0 0.0
        %1045 = vmatpush1.msra.mxu0 0.0
        %1046 = vmatprep.subr.mxu0 0.0
        %1047 = vmatpush1.msra.mxu0 0.0
        %1048 = vmatprep.subr.mxu0 0.0
        %1049 = vmatpush1.msra.mxu0 0.0
        %1050 = vmatprep.subr.mxu0 0.0
        %1051 = vmatpush1.msra.mxu0 0.0
        %1052 = vmatprep.subr.mxu0 0.0
        %1053 = vmatpush1.msra.mxu0 0.0
        %1054 = vmatprep.subr.mxu0 0.0
        %1055 = vmatpush1.msra.mxu0 0.0
        %1056 = vmatprep.subr.mxu0 0.0
        %1057 = vmatpush1.msra.mxu0 0.0
        %1058 = vmatprep.subr.mxu0 0.0
        %1059 = vmatpush1.msra.mxu0 0.0
        %1060 = vmatprep.subr.mxu0 0.0
        %1061 = vmatpush1.msra.mxu0 0.0
        %1062 = vmatprep.subr.mxu0 0.0
        %1063 = vmatpush1.msra.mxu0 0.0
        %1064 = vmatprep.subr.mxu0 0.0
        %1065 = vmatpush1.msra.mxu0 0.0
        %1066 = vmatprep.subr.mxu0 0.0
        %1067 = vmatpush1.msra.mxu0 %v795
        %1068 = vmatprep.subr.mxu0 0.0
        %1069 = vmatpush1.msra.mxu0 %v794
        %1070 = vmatprep.subr.mxu0 0.0
        %1071 = vmatpush1.msra.mxu0 %v793
        %1072 = vmatprep.subr.mxu0 0.0
        %1073 = vmatpush1.msra.mxu0 %v792
        %1074 = vmatprep.subr.mxu0 0.0
        %1075 = vmatpush2.msra.mxu0 0.0
        %1076 = vmatprep.subr.mxu0 0.0
        %1077 = vmatpush2.msra.mxu0 0.0
        %1078 = vmatprep.subr.mxu0 0.0
        %1079 = vmatpush2.msra.mxu0 0.0
        %1080 = vmatprep.subr.mxu0 0.0
        %1081 = vmatpush2.msra.mxu0 0.0
        %1082 = vmatprep.subr.mxu0 0.0
        %1083 = vmatpush2.msra.mxu0 0.0
        %1084 = vmatprep.subr.mxu0 0.0
        %1085 = vmatpush2.msra.mxu0 0.0
        %1086 = vmatprep.subr.mxu0 0.0
        %1087 = vmatpush2.msra.mxu0 0.0
        %1088 = vmatprep.subr.mxu0 0.0
        %1089 = vmatpush2.msra.mxu0 0.0
        %1090 = vmatprep.subr.mxu0 0.0
        %1091 = vmatpush2.msra.mxu0 0.0
        %1092 = vmatprep.subr.mxu0 0.0
        %1093 = vmatpush2.msra.mxu0 0.0
        %1094 = vmatprep.subr.mxu0 0.0
        %1095 = vmatpush2.msra.mxu0 0.0
        %1096 = vmatprep.subr.mxu0 0.0
        %1097 = vmatpush2.msra.mxu0 0.0
        %1098 = vmatprep.subr.mxu0 0.0
        %1099 = vmatpush2.msra.mxu0 0.0
        %1100 = vmatprep.subr.mxu0 0.0
        %1101 = vmatpush2.msra.mxu0 0.0
        %1102 = vmatprep.subr.mxu0 0.0
        %1103 = vmatpush2.msra.mxu0 0.0
        %1104 = vmatprep.subr.mxu0 0.0
        %1105 = vmatpush2.msra.mxu0 0.0
        %1106 = vmatprep.mubr.f32.mxu0 0.0
        %1107 = vmatmul.mubr.f32.gmra.mxu0 %v995
        %v1108 = vpop.f32.mrf.mxu0
        %v1109 = vadd.f32 %v916, %v1108
        %v1110 = vpop.f32.mrf.mxu0
        %1111 = vmatprep.mubr.f32.mxu0 0.0
        %1112 = vmatmul.mubr.f32.gmra.mxu0 %v998
        %v1113 = vpop.f32.mrf.mxu0
        %v1114 = vadd.f32 %v921, %v1113
        %v1115 = vpop.f32.mrf.mxu0
        %1116 = vmatprep.mubr.f32.mxu0 0.0
        %1117 = vmatmul.mubr.f32.gmra.mxu0 %v1001
        %v1118 = vpop.f32.mrf.mxu0
        %v1119 = vadd.f32 %v926, %v1118
        %v1120 = vpop.f32.mrf.mxu0
        %1121 = vmatprep.mubr.f32.mxu0 0.0
        %1122 = vmatmul.mubr.f32.gmra.mxu0 %v1004
        %v1123 = vpop.f32.mrf.mxu0
        %v1124 = vadd.f32 %v931, %v1123
        %v1125 = vpop.f32.mrf.mxu0
        %1126 = vmatprep.mubr.f32.mxu0 0.0
        %1127 = vmatmul.mubr.f32.gmra.mxu0 %v1007
        %v1128 = vpop.f32.mrf.mxu0
        %v1129 = vadd.f32 %v936, %v1128
        %v1130 = vpop.f32.mrf.mxu0
        %1131 = vmatprep.mubr.f32.mxu0 0.0
        %1132 = vmatmul.mubr.f32.gmra.mxu0 %v1010
        %v1133 = vpop.f32.mrf.mxu0
        %v1134 = vadd.f32 %v941, %v1133
        %v1135 = vpop.f32.mrf.mxu0
        %1136 = vmatprep.mubr.f32.mxu0 0.0
        %1137 = vmatmul.mubr.f32.gmra.mxu0 %v1013
        %v1138 = vpop.f32.mrf.mxu0
        %v1139 = vadd.f32 %v946, %v1138
        %v1140 = vpop.f32.mrf.mxu0
        %1141 = vmatprep.mubr.f32.mxu0 0.0
        %1142 = vmatmul.mubr.f32.gmra.mxu0 %v1016
        %v1143 = vpop.f32.mrf.mxu0
        %v1144 = vadd.f32 %v951, %v1143
        %v1145 = vpop.f32.mrf.mxu0
        %1146 = vmatprep.mubr.f32.mxu0 0.0
        %1147 = vmatmul.mubr.f32.gmra.mxu0 %v1019
        %v1148 = vpop.f32.mrf.mxu0
        %v1149 = vadd.f32 %v956, %v1148
        %v1150 = vpop.f32.mrf.mxu0
        %1151 = vmatprep.mubr.f32.mxu0 0.0
        %1152 = vmatmul.mubr.f32.gmra.mxu0 %v1022
        %v1153 = vpop.f32.mrf.mxu0
        %v1154 = vadd.f32 %v961, %v1153
        %v1155 = vpop.f32.mrf.mxu0
        %1156 = vmatprep.mubr.f32.mxu0 0.0
        %1157 = vmatmul.mubr.f32.gmra.mxu0 %v1025
        %v1158 = vpop.f32.mrf.mxu0
        %v1159 = vadd.f32 %v966, %v1158
        %v1160 = vpop.f32.mrf.mxu0
        %1161 = vmatprep.mubr.f32.mxu0 0.0
        %1162 = vmatmul.mubr.f32.gmra.mxu0 %v1028
        %v1163 = vpop.f32.mrf.mxu0
        %v1164 = vadd.f32 %v971, %v1163
        %v1165 = vpop.f32.mrf.mxu0
        %1166 = vmatprep.mubr.f32.mxu0 0.0
        %1167 = vmatmul.mubr.f32.gmra.mxu0 %v1031
        %v1168 = vpop.f32.mrf.mxu0
        %v1169 = vadd.f32 %v976, %v1168
        %v1170 = vpop.f32.mrf.mxu0
        %1171 = vmatprep.mubr.f32.mxu0 0.0
        %1172 = vmatmul.mubr.f32.gmra.mxu0 %v1034
        %v1173 = vpop.f32.mrf.mxu0
        %v1174 = vadd.f32 %v981, %v1173
        %v1175 = vpop.f32.mrf.mxu0
        %1176 = vmatprep.mubr.f32.mxu0 0.0
        %1177 = vmatmul.mubr.f32.gmra.mxu0 %v1037
        %v1178 = vpop.f32.mrf.mxu0
        %v1179 = vadd.f32 %v986, %v1178
        %v1180 = vpop.f32.mrf.mxu0
        %1181 = vmatprep.mubr.f32.mxu0 0.0
        %1182 = vmatmul.mubr.f32.gmra.mxu0 %v1040
        %v1183 = vpop.f32.mrf.mxu0
        %v1184 = vadd.f32 %v991, %v1183
        %v1185 = vpop.f32.mrf.mxu0
        %1186 = vdwg.mxu0
        %vm1187 = vcmp.ge.f32.partialorder %v1109, 0.0
        %vm1188 = vcmp.ge.f32.partialorder %v1114, 0.0
        %vm1189 = vcmp.ge.f32.partialorder %v1119, 0.0
        %vm1190 = vcmp.ge.f32.partialorder %v1124, 0.0
        %vm1191 = vcmp.ge.f32.partialorder %v1129, 0.0
        %vm1192 = vcmp.ge.f32.partialorder %v1134, 0.0
        %vm1193 = vcmp.ge.f32.partialorder %v1139, 0.0
        %vm1194 = vcmp.ge.f32.partialorder %v1144, 0.0
        %vm1195 = vcmp.ge.f32.partialorder %v1149, 0.0
        %vm1196 = vcmp.ge.f32.partialorder %v1154, 0.0
        %vm1197 = vcmp.ge.f32.partialorder %v1159, 0.0
        %vm1198 = vcmp.ge.f32.partialorder %v1164, 0.0
        %vm1199 = vcmp.ge.f32.partialorder %v1169, 0.0
        %vm1200 = vcmp.ge.f32.partialorder %v1174, 0.0
        %vm1201 = vcmp.ge.f32.partialorder %v1179, 0.0
        %vm1202 = vcmp.ge.f32.partialorder %v1184, 0.0
        %v1203 = vmul.f32 %v1109, 0.2
        %v1204 = vmul.f32 %v1114, 0.2
        %v1205 = vmul.f32 %v1119, 0.2
        %v1206 = vmul.f32 %v1124, 0.2
        %v1207 = vmul.f32 %v1129, 0.2
        %v1208 = vmul.f32 %v1134, 0.2
        %v1209 = vmul.f32 %v1139, 0.2
        %v1210 = vmul.f32 %v1144, 0.2
        %v1211 = vmul.f32 %v1149, 0.2
        %v1212 = vmul.f32 %v1154, 0.2
        %v1213 = vmul.f32 %v1159, 0.2
        %v1214 = vmul.f32 %v1164, 0.2
        %v1215 = vmul.f32 %v1169, 0.2
        %v1216 = vmul.f32 %v1174, 0.2
        %v1217 = vmul.f32 %v1179, 0.2
        %v1218 = vmul.f32 %v1184, 0.2
        %v1219 = vsel %vm1187, %v1109, %v1203
        %v1220 = vsel %vm1188, %v1114, %v1204
        %v1221 = vsel %vm1189, %v1119, %v1205
        %v1222 = vsel %vm1190, %v1124, %v1206
        %v1223 = vsel %vm1191, %v1129, %v1207
        %v1224 = vsel %vm1192, %v1134, %v1208
        %v1225 = vsel %vm1193, %v1139, %v1209
        %v1226 = vsel %vm1194, %v1144, %v1210
        %v1227 = vsel %vm1195, %v1149, %v1211
        %v1228 = vsel %vm1196, %v1154, %v1212
        %v1229 = vsel %vm1197, %v1159, %v1213
        %v1230 = vsel %vm1198, %v1164, %v1214
        %v1231 = vsel %vm1199, %v1169, %v1215
        %v1232 = vsel %vm1200, %v1174, %v1216
        %v1233 = vsel %vm1201, %v1179, %v1217
        %v1234 = vsel %vm1202, %v1184, %v1218
        %v1235 = vadd.f32 %v1219, 1.0
        %v1236 = vadd.f32 %v1220, 1.0
        %v1237 = vadd.f32 %v1221, 1.0
        %v1238 = vadd.f32 %v1222, 1.0
        %v1239 = vadd.f32 %v1223, 1.0
        %v1240 = vadd.f32 %v1224, 1.0
        %v1241 = vadd.f32 %v1225, 1.0
        %v1242 = vadd.f32 %v1226, 1.0
        %v1243 = vadd.f32 %v1227, 1.0
        %v1244 = vadd.f32 %v1228, 1.0
        %v1245 = vadd.f32 %v1229, 1.0
        %v1246 = vadd.f32 %v1230, 1.0
        %v1247 = vadd.f32 %v1231, 1.0
        %v1248 = vadd.f32 %v1232, 1.0
        %v1249 = vadd.f32 %v1233, 1.0
        %v1250 = vadd.f32 %v1234, 1.0
        %v1251 = vld [vmem:[%s6] sm:$0x1]
        %v1253 = vlaneseq
        %v1254 = vshrl.u32 %v1253, 7
        %v1255 = vsub.s32 0, %v1254
        %v1256 = vrot.slane %v1251, %v1255
        %v1258 = vmul.f32 %v1235, %v1256
        %v1259 = vmul.f32 %v1236, %v1256
        %v1260 = vmul.f32 %v1237, %v1256
        %v1261 = vmul.f32 %v1238, %v1256
        %v1262 = vmul.f32 %v1239, %v1256
        %v1263 = vmul.f32 %v1240, %v1256
        %v1264 = vmul.f32 %v1241, %v1256
        %v1265 = vmul.f32 %v1242, %v1256
        %v1266 = vmul.f32 %v1243, %v1256
        %v1267 = vmul.f32 %v1244, %v1256
        %v1268 = vmul.f32 %v1245, %v1256
        %v1269 = vmul.f32 %v1246, %v1256
        %v1270 = vmul.f32 %v1247, %v1256
        %v1271 = vmul.f32 %v1248, %v1256
        %v1272 = vmul.f32 %v1249, %v1256
        %v1273 = vmul.f32 %v1250, %v1256
        %1290 = vrot.lane.b32.xlu0 %v1219, 96
        %v1291 = vpop.permute.xlu0 %1290
        %1292 = vrot.lane.b32.xlu0 %v1220, 96
        %v1293 = vpop.permute.xlu0 %1292
        %1294 = vrot.lane.b32.xlu0 %v1221, 96
        %v1295 = vpop.permute.xlu0 %1294
        %1296 = vrot.lane.b32.xlu0 %v1222, 96
        %v1297 = vpop.permute.xlu0 %1296
        %1298 = vrot.lane.b32.xlu0 %v1223, 96
        %v1299 = vpop.permute.xlu0 %1298
        %1300 = vrot.lane.b32.xlu0 %v1224, 96
        %v1301 = vpop.permute.xlu0 %1300
        %1302 = vrot.lane.b32.xlu0 %v1225, 96
        %v1303 = vpop.permute.xlu0 %1302
        %1304 = vrot.lane.b32.xlu0 %v1226, 96
        %v1305 = vpop.permute.xlu0 %1304
        %1306 = vrot.lane.b32.xlu0 %v1227, 96
        %v1307 = vpop.permute.xlu0 %1306
        %1308 = vrot.lane.b32.xlu0 %v1228, 96
        %v1309 = vpop.permute.xlu0 %1308
        %1310 = vrot.lane.b32.xlu0 %v1229, 96
        %v1311 = vpop.permute.xlu0 %1310
        %1312 = vrot.lane.b32.xlu0 %v1230, 96
        %v1313 = vpop.permute.xlu0 %1312
        %1314 = vrot.lane.b32.xlu0 %v1231, 96
        %v1315 = vpop.permute.xlu0 %1314
        %1316 = vrot.lane.b32.xlu0 %v1232, 96
        %v1317 = vpop.permute.xlu0 %1316
        %1318 = vrot.lane.b32.xlu0 %v1233, 96
        %v1319 = vpop.permute.xlu0 %1318
        %1320 = vrot.lane.b32.xlu0 %v1234, 96
        %v1321 = vpop.permute.xlu0 %1320
        %v1338 = vadd.f32 %v1258, %v1291
        %v1339 = vadd.f32 %v1259, %v1293
        %v1340 = vadd.f32 %v1260, %v1295
        %v1341 = vadd.f32 %v1261, %v1297
        %v1342 = vadd.f32 %v1262, %v1299
        %v1343 = vadd.f32 %v1263, %v1301
        %v1344 = vadd.f32 %v1264, %v1303
        %v1345 = vadd.f32 %v1265, %v1305
        %v1346 = vadd.f32 %v1266, %v1307
        %v1347 = vadd.f32 %v1267, %v1309
        %v1348 = vadd.f32 %v1268, %v1311
        %v1349 = vadd.f32 %v1269, %v1313
        %v1350 = vadd.f32 %v1270, %v1315
        %v1351 = vadd.f32 %v1271, %v1317
        %v1352 = vadd.f32 %v1272, %v1319
        %v1353 = vadd.f32 %v1273, %v1321
        %v1354 = vadd.f32 %v776, %v1338
        %v1355 = vadd.f32 %v777, %v1339
        %v1356 = vadd.f32 %v778, %v1340
        %v1357 = vadd.f32 %v779, %v1341
        %v1358 = vadd.f32 %v780, %v1342
        %v1359 = vadd.f32 %v781, %v1343
        %v1360 = vadd.f32 %v782, %v1344
        %v1361 = vadd.f32 %v783, %v1345
        %v1362 = vadd.f32 %v784, %v1346
        %v1363 = vadd.f32 %v785, %v1347
        %v1364 = vadd.f32 %v786, %v1348
        %v1365 = vadd.f32 %v787, %v1349
        %v1366 = vadd.f32 %v788, %v1350
        %v1367 = vadd.f32 %v789, %v1351
        %v1368 = vadd.f32 %v790, %v1352
        %v1369 = vadd.f32 %v791, %v1353
        %v1370 = vsub.f32 %v1354, %v521
        %v1371 = vsub.f32 %v1355, %v526
        %v1372 = vsub.f32 %v1356, %v531
        %v1373 = vsub.f32 %v1357, %v536
        %v1374 = vsub.f32 %v1358, %v541
        %v1375 = vsub.f32 %v1359, %v546
        %v1376 = vsub.f32 %v1360, %v551
        %v1377 = vsub.f32 %v1361, %v556
        %v1378 = vsub.f32 %v1362, %v561
        %v1379 = vsub.f32 %v1363, %v566
        %v1380 = vsub.f32 %v1364, %v571
        %v1381 = vsub.f32 %v1365, %v576
        %v1382 = vsub.f32 %v1366, %v581
        %v1383 = vsub.f32 %v1367, %v586
        %v1384 = vsub.f32 %v1368, %v591
        %v1385 = vsub.f32 %v1369, %v596
        %1386 = vst.msk [vmem:[%s388] sm:$0xff] %vm800, %v1370
        %1387 = vst.msk [vmem:[%s388 + $0x8] sm:$0xff] %vm800, %v1371
        %1388 = vst.msk [vmem:[%s388 + $0x10] sm:$0xff] %vm800, %v1372
        %1389 = vst.msk [vmem:[%s388 + $0x18] sm:$0xff] %vm800, %v1373
        %1390 = vst.msk [vmem:[%s388 + $0x20] sm:$0xff] %vm800, %v1374
        %1391 = vst.msk [vmem:[%s388 + $0x28] sm:$0xff] %vm800, %v1375
        %1392 = vst.msk [vmem:[%s388 + $0x30] sm:$0xff] %vm800, %v1376
        %1393 = vst.msk [vmem:[%s388 + $0x38] sm:$0xff] %vm800, %v1377
        %1394 = vst.msk [vmem:[%s388 + $0x40] sm:$0xff] %vm800, %v1378
        %1395 = vst.msk [vmem:[%s388 + $0x48] sm:$0xff] %vm800, %v1379
        %1396 = vst.msk [vmem:[%s388 + $0x50] sm:$0xff] %vm800, %v1380
        %1397 = vst.msk [vmem:[%s388 + $0x58] sm:$0xff] %vm800, %v1381
        %1398 = vst.msk [vmem:[%s388 + $0x60] sm:$0xff] %vm800, %v1382
        %1399 = vst.msk [vmem:[%s388 + $0x68] sm:$0xff] %vm800, %v1383
        %1400 = vst.msk [vmem:[%s388 + $0x70] sm:$0xff] %vm800, %v1384
        %1401 = vst.msk [vmem:[%s388 + $0x78] sm:$0xff] %vm800, %v1385
        %1402 = vst.msk [vmem:[%s382] sm:$0xff] %vm800, %v698
        %1403 = vst.msk [vmem:[%s382 + $0x8] sm:$0xff] %vm800, %v703
        %1404 = vst.msk [vmem:[%s382 + $0x10] sm:$0xff] %vm800, %v708
        %1405 = vst.msk [vmem:[%s382 + $0x18] sm:$0xff] %vm800, %v713
        %1406 = vst.msk [vmem:[%s382 + $0x20] sm:$0xff] %vm800, %v718
        %1407 = vst.msk [vmem:[%s382 + $0x28] sm:$0xff] %vm800, %v723
        %1408 = vst.msk [vmem:[%s382 + $0x30] sm:$0xff] %vm800, %v728
        %1409 = vst.msk [vmem:[%s382 + $0x38] sm:$0xff] %vm800, %v733
        %1410 = vst.msk [vmem:[%s382 + $0x40] sm:$0xff] %vm800, %v738
        %1411 = vst.msk [vmem:[%s382 + $0x48] sm:$0xff] %vm800, %v743
        %1412 = vst.msk [vmem:[%s382 + $0x50] sm:$0xff] %vm800, %v748
        %1413 = vst.msk [vmem:[%s382 + $0x58] sm:$0xff] %vm800, %v753
        %1414 = vst.msk [vmem:[%s382 + $0x60] sm:$0xff] %vm800, %v758
        %1415 = vst.msk [vmem:[%s382 + $0x68] sm:$0xff] %vm800, %v763
        %1416 = vst.msk [vmem:[%s382 + $0x70] sm:$0xff] %vm800, %v768
        %1417 = vst.msk [vmem:[%s382 + $0x78] sm:$0xff] %vm800, %v773
        %s1418 = smul.u32 16, %s23
        %p1419 = scmp.lt.s32.totalorder %s1418, 31
        %s1420 = scalar_select %p1419, %s1418, 31
        %s1421 = smul.addr %s1420, 8
        %s1422 = scalar_lea.vmem %s7, %s1421
        %s1423 = smul.u32 16, %s23
        %p1424 = scmp.lt.s32.totalorder %s1423, 31
        %s1425 = scalar_select %p1424, %s1423, 31
        %s1426 = smul.addr %s1425, 8
        %s1427 = scalar_lea.vmem %s8, %s1426
        // Predicated region
        $region53: #{tpu_custom_call.1} parent=47 // pred_check
          %p1428 = pneg %p203
        $region54: #{tpu_custom_call.1} parent=47 // pred_check_branch
          %1430 = sbr.rel (%p1428) target = $region56
        $region55: #{tpu_custom_call.1} parent=47 // pred_region
          %s1431 = smul.u32 16, %s23
        $region56: #{tpu_custom_call.1} parent=47 // pred_fallthru
          _
        // Predicated region
        $region57: #{tpu_custom_call.1} parent=47 // pred_check
          %p1432 = pneg %p229
        $region58: #{tpu_custom_call.1} parent=47 // pred_check_branch
          %1434 = sbr.rel (%p1432) target = $region60
        $region59: #{tpu_custom_call.1} parent=47 // pred_region
          %s1435 = smul.u32 16, %s23
        $region60: #{tpu_custom_call.1} parent=47 // pred_fallthru
          _
      $region48: #{tpu_custom_call.1} parent=5 // pred_fallthru
        _
      %p1436 = scmp.le.s32.totalorder 2, %s18
      // Predicated region
      $region61: #{tpu_custom_call.1} parent=5 // pred_check
        %p1437 = pneg %p1436
      $region62: #{tpu_custom_call.1} parent=5 // pred_check_branch
        %1439 = sbr.rel (%p1437) target = $region64
      $region63: #{tpu_custom_call.1} parent=5 // pred_region
        %s1440 = ssub.s32 %s18, 2
        // Predicated region
        $region65: #{tpu_custom_call.1} parent=63 // pred_check
          %p1441 = pneg %p209
        $region66: #{tpu_custom_call.1} parent=63 // pred_check_branch
          %1443 = sbr.rel (%p1441) target = $region68
        $region67: #{tpu_custom_call.1} parent=63 // pred_region
          %s1444 = smul.u32 16, %s24
          %p1445 = scmp.lt.s32.totalorder %s1444, 31
          %s1446 = scalar_select %p1445, %s1444, 31
          %s1447 = smul.addr %s1446, 8
          %s1448 = scalar_lea.vmem %s7, %s1447
        $region68: #{tpu_custom_call.1} parent=63 // pred_fallthru
          _
        // Predicated region
        $region69: #{tpu_custom_call.1} parent=63 // pred_check
          %p1449 = pneg %p235
        $region70: #{tpu_custom_call.1} parent=63 // pred_check_branch
          %1451 = sbr.rel (%p1449) target = $region72
        $region71: #{tpu_custom_call.1} parent=63 // pred_region
          %s1452 = smul.u32 16, %s24
          %p1453 = scmp.lt.s32.totalorder %s1452, 31
          %s1454 = scalar_select %p1453, %s1452, 31
          %s1455 = smul.addr %s1454, 8
          %s1456 = scalar_lea.vmem %s8, %s1455
        $region72: #{tpu_custom_call.1} parent=63 // pred_fallthru
          _
      $region64: #{tpu_custom_call.1} parent=5 // pred_fallthru
        _
    $region6: #{tpu_custom_call.1} parent=1 // loop_footer
      %s22 = sadd.s32 1, %s18
    $region7: #{tpu_custom_call.1} parent=1 // loop_footer_branch
      %17 = sbr.rel target = $region3
    $region8: #{tpu_custom_call.1} parent=1 // loop_exit
      _
    %1457 = vsyncpa [#allocation3], 1
    %s1458 = scalar_lea.sflag [#allocation3], 1
    %1459 = vsyncpa %s1458, 1

</llo_original>
